<compile_context>
chip_gen: v5e
topology: v5e:2x2
jax: 0.10.0
libtpu: 0.0.40
codegen_flags: <defaults>
</compile_context>

<pallas_src>
import jax
import jax.numpy as jnp
from jax.experimental import pallas as pl
from jax.experimental.pallas import tpu as pltpu

C_IN = 80
C_OUT = 96
K = 21
LANE = 128
MAX_TILE_L = 1024  # safe for v5e (16 MiB scoped) and v7x (64 MiB/TC); v6e can go larger


def conv1d_kernel(x_ref, halo_ref, w_ref, b_ref, o_ref):
    # x_ref:    (1, C_IN, TILE_L)   f32  main input tile (cast to bf16 in-kernel)
    # halo_ref: (1, C_IN, 128)      f32  next 128 input columns (only first K-1 used)
    # w_ref:    (C_OUT, K*C_IN)     bf16 tap-major folded weights (constant block)
    # b_ref:    (C_OUT, 1)          f32  (constant block)
    # o_ref:    (1, C_OUT, TILE_L)  f32  boundary tile is masked on store
    tile_l = o_ref.shape[2]
    xm = x_ref[0].astype(jnp.bfloat16)                       # (C_IN, TILE_L)
    xh = halo_ref[0].astype(jnp.bfloat16)                    # (C_IN, 128)
    xw = jnp.concatenate([xm, xh], axis=1)                   # (C_IN, TILE_L + 128)
    # In-kernel im2col: fold the K taps into the contraction (sublane) axis so the
    # whole conv becomes one depth K*C_IN = 1680 MXU matmul.
    x_col = jnp.concatenate([xw[:, k:k + tile_l] for k in range(K)], axis=0)
    acc = jnp.dot(w_ref[...], x_col,
                  preferred_element_type=jnp.float32)        # (C_OUT, TILE_L) f32
    o_ref[0] = acc + b_ref[...]                              # bias broadcast over lanes


def cnn2_forward(x_ncl, weight, bias, *, max_tile_l=MAX_TILE_L):
    """x_ncl: (N, 80, L) f32; weight: (96, 80, 21) f32; bias: (96,) f32.
    Returns (N, 96, L - 20) f32 — same semantics as the PyTorch module
    (bf16 x bf16 products with f32 accumulation inside the kernel)."""
    n, c_in, l = x_ncl.shape
    assert c_in == C_IN and l >= K
    l_out = l - K + 1

    tile_l = min(max_tile_l, pl.cdiv(l_out, LANE) * LANE)    # multiple of 128
    num_tiles = pl.cdiv(l_out, tile_l)
    blk_per_tile = tile_l // LANE

    # Only short sequences need padding (so block shapes never exceed array dims).
    # Long sequences are fed untouched: no wrapper cast/pad HBM round trip.
    x_in, l_in = x_ncl, l
    if l_in < tile_l:
        x_in = jnp.pad(x_ncl, ((0, 0), (0, 0), (0, tile_l - l_in)))
        l_in = tile_l
    max_halo_blk = (l_in - 1) // LANE  # last existing (possibly partial) 128-block

    # Fold weights tap-major: W2[o, k*C_IN + c] = weight[o, c, k]  (tiny, one-time).
    w2 = jnp.transpose(weight, (0, 2, 1)).reshape(C_OUT, K * C_IN).astype(jnp.bfloat16)
    b2 = bias.astype(jnp.float32).reshape(C_OUT, 1)

    def halo_map(i, j):
        # First 128 columns of the *next* tile; clamped to an in-bounds block.
        # Whenever the clamp fires, no valid output column needs the halo.
        return (i, 0, jnp.minimum((j + 1) * blk_per_tile, max_halo_blk))

    # Output written at (almost) true length: pad only when a single tile is wider
    # than l_out (short-sequence case); otherwise the boundary tile is a masked store.
    out_l = max(l_out, tile_l)

    flops = 2 * n * C_OUT * K * C_IN * l_out
    bytes_accessed = (x_in.size * 4 + w2.size * 2 + b2.size * 4
                      + n * C_OUT * l_out * 4)

    out = pl.pallas_call(
        conv1d_kernel,
        out_shape=jax.ShapeDtypeStruct((n, C_OUT, out_l), jnp.float32),
        grid_spec=pltpu.PrefetchScalarGridSpec(
            num_scalar_prefetch=0,
            grid=(n, num_tiles),
            in_specs=[
                pl.BlockSpec((1, C_IN, tile_l), lambda i, j: (i, 0, j)),
                pl.BlockSpec((1, C_IN, LANE), halo_map),
                pl.BlockSpec((C_OUT, K * C_IN), lambda i, j: (0, 0)),  # constant block
                pl.BlockSpec((C_OUT, 1), lambda i, j: (0, 0)),         # constant block
            ],
            out_specs=pl.BlockSpec((1, C_OUT, tile_l), lambda i, j: (i, 0, j)),
        ),
        compiler_params=pltpu.CompilerParams(
            dimension_semantics=("parallel", "parallel"),  # shards across TCs on v7x
            vmem_limit_bytes=32 * 1024 * 1024,
        ),
        cost_estimate=pl.CostEstimate(
            flops=flops, transcendentals=0, bytes_accessed=bytes_accessed),
    )(x_in, x_in, w2, b2)

    if out_l != l_out:
        out = out[:, :, :l_out]
    return out


def reference_conv1d(x_ncl, weight, bias):
    # Plain-JAX reference (sliding-window einsum) for a silent sanity check.
    n, c_in, l = x_ncl.shape
    l_out = l - K + 1
    windows = jnp.stack([x_ncl[:, :, k:k + l_out] for k in range(K)], axis=-1)  # (N,Cin,Lout,K)
    return jnp.einsum("nclk,ock->nol", windows, weight) + bias[None, :, None]


if __name__ == "__main__":
    key = jax.random.PRNGKey(0)
    k_x, k_w, k_b = jax.random.split(key, 3)

    # Small shapes consistent with the module: batch=2, 80 input channels, seq length 48.
    N, L = 2, 48
    x = jax.random.normal(k_x, (N, C_IN, L), dtype=jnp.float32)

    # Deterministic PyTorch-style init: U(-bound, bound), bound = 1/sqrt(C_in * K)
    bound = 1.0 / jnp.sqrt(jnp.float32(C_IN * K))
    weight = jax.random.uniform(k_w, (C_OUT, C_IN, K), jnp.float32, -bound, bound)
    bias = jax.random.uniform(k_b, (C_OUT,), jnp.float32, -bound, bound)

    out = cnn2_forward(x, weight, bias)
    out = jax.block_until_ready(out)

    # Reference computed on the same bf16-rounded operands (kernel does bf16 x bf16
    # products with f32 accumulation), so only accumulation-order error remains.
    x_bf = x.astype(jnp.bfloat16).astype(jnp.float32)
    w_bf = weight.astype(jnp.bfloat16).astype(jnp.float32)
    ref = reference_conv1d(x_bf, w_bf, bias)

    assert out.shape == (N, C_OUT, L - K + 1)
    assert jnp.allclose(out, ref, atol=1e-2, rtol=1e-2)

    print("KERNEL_OK")
</pallas_src>

<mosaic_0001>
module attributes {stable_mosaic.version = 11 : i64} {
  func.func @conv1d_kernel(%arg0: i32, %arg1: i32, %arg2: memref<1x80x128xf32, #tpu.memory_space<vmem>>, %arg3: memref<1x80x128xf32, #tpu.memory_space<vmem>>, %arg4: memref<96x1680xbf16, #tpu.memory_space<vmem>>, %arg5: memref<96x1xf32, #tpu.memory_space<vmem>>, %arg6: memref<1x96x128xf32, #tpu.memory_space<vmem>>) attributes {dimension_semantics = [#tpu.dimension_semantics<parallel>, #tpu.dimension_semantics<parallel>], iteration_bounds = array<i64: 2, 1>, scalar_prefetch = 0 : i64, scratch_operands = 0 : i64, tpu.core_type = #tpu.core_type<tc>, window_params = [{transform_indices = @transform_0, window_bounds = array<i64: 1, 80, 128>}, {transform_indices = @transform_1, window_bounds = array<i64: 1, 80, 128>}, {pipeline_mode = #tpu.pipeline_mode<synchronous>, transform_indices = @transform_2, window_bounds = array<i64: 96, 1680>}, {pipeline_mode = #tpu.pipeline_mode<synchronous>, transform_indices = @transform_3, window_bounds = array<i64: 96, 1>}, {transform_indices = @transform_4, window_bounds = array<i64: 1, 96, 128>}]} {
    %c0 = arith.constant 0 : index
    %c0_0 = arith.constant 0 : index
    %c0_1 = arith.constant 0 : index
    %0 = vector.load %arg2[%c0, %c0_0, %c0_1] : memref<1x80x128xf32, #tpu.memory_space<vmem>>, vector<1x80x128xf32>
    %1 = vector.shape_cast %0 : vector<1x80x128xf32> to vector<80x128xf32>
    %2 = arith.truncf %1 : vector<80x128xf32> to vector<80x128xbf16>
    %c0_2 = arith.constant 0 : index
    %c0_3 = arith.constant 0 : index
    %c0_4 = arith.constant 0 : index
    %3 = vector.load %arg3[%c0_2, %c0_3, %c0_4] : memref<1x80x128xf32, #tpu.memory_space<vmem>>, vector<1x80x128xf32>
    %4 = vector.shape_cast %3 : vector<1x80x128xf32> to vector<80x128xf32>
    %5 = arith.truncf %4 : vector<80x128xf32> to vector<80x128xbf16>
    %6 = tpu.concatenate %2, %5 in 1 : vector<80x128xbf16>, vector<80x128xbf16> -> vector<80x256xbf16>
    %7 = vector.extract_strided_slice %6 {offsets = [0, 0], sizes = [80, 128], strides = [1, 1]} : vector<80x256xbf16> to vector<80x128xbf16>
    %8 = vector.extract_strided_slice %6 {offsets = [0, 1], sizes = [80, 128], strides = [1, 1]} : vector<80x256xbf16> to vector<80x128xbf16>
    %9 = vector.extract_strided_slice %6 {offsets = [0, 2], sizes = [80, 128], strides = [1, 1]} : vector<80x256xbf16> to vector<80x128xbf16>
    %10 = vector.extract_strided_slice %6 {offsets = [0, 3], sizes = [80, 128], strides = [1, 1]} : vector<80x256xbf16> to vector<80x128xbf16>
    %11 = vector.extract_strided_slice %6 {offsets = [0, 4], sizes = [80, 128], strides = [1, 1]} : vector<80x256xbf16> to vector<80x128xbf16>
    %12 = vector.extract_strided_slice %6 {offsets = [0, 5], sizes = [80, 128], strides = [1, 1]} : vector<80x256xbf16> to vector<80x128xbf16>
    %13 = vector.extract_strided_slice %6 {offsets = [0, 6], sizes = [80, 128], strides = [1, 1]} : vector<80x256xbf16> to vector<80x128xbf16>
    %14 = vector.extract_strided_slice %6 {offsets = [0, 7], sizes = [80, 128], strides = [1, 1]} : vector<80x256xbf16> to vector<80x128xbf16>
    %15 = vector.extract_strided_slice %6 {offsets = [0, 8], sizes = [80, 128], strides = [1, 1]} : vector<80x256xbf16> to vector<80x128xbf16>
    %16 = vector.extract_strided_slice %6 {offsets = [0, 9], sizes = [80, 128], strides = [1, 1]} : vector<80x256xbf16> to vector<80x128xbf16>
    %17 = vector.extract_strided_slice %6 {offsets = [0, 10], sizes = [80, 128], strides = [1, 1]} : vector<80x256xbf16> to vector<80x128xbf16>
    %18 = vector.extract_strided_slice %6 {offsets = [0, 11], sizes = [80, 128], strides = [1, 1]} : vector<80x256xbf16> to vector<80x128xbf16>
    %19 = vector.extract_strided_slice %6 {offsets = [0, 12], sizes = [80, 128], strides = [1, 1]} : vector<80x256xbf16> to vector<80x128xbf16>
    %20 = vector.extract_strided_slice %6 {offsets = [0, 13], sizes = [80, 128], strides = [1, 1]} : vector<80x256xbf16> to vector<80x128xbf16>
    %21 = vector.extract_strided_slice %6 {offsets = [0, 14], sizes = [80, 128], strides = [1, 1]} : vector<80x256xbf16> to vector<80x128xbf16>
    %22 = vector.extract_strided_slice %6 {offsets = [0, 15], sizes = [80, 128], strides = [1, 1]} : vector<80x256xbf16> to vector<80x128xbf16>
    %23 = vector.extract_strided_slice %6 {offsets = [0, 16], sizes = [80, 128], strides = [1, 1]} : vector<80x256xbf16> to vector<80x128xbf16>
    %24 = vector.extract_strided_slice %6 {offsets = [0, 17], sizes = [80, 128], strides = [1, 1]} : vector<80x256xbf16> to vector<80x128xbf16>
    %25 = vector.extract_strided_slice %6 {offsets = [0, 18], sizes = [80, 128], strides = [1, 1]} : vector<80x256xbf16> to vector<80x128xbf16>
    %26 = vector.extract_strided_slice %6 {offsets = [0, 19], sizes = [80, 128], strides = [1, 1]} : vector<80x256xbf16> to vector<80x128xbf16>
    %27 = vector.extract_strided_slice %6 {offsets = [0, 20], sizes = [80, 128], strides = [1, 1]} : vector<80x256xbf16> to vector<80x128xbf16>
    %28 = tpu.concatenate %7, %8, %9, %10, %11, %12, %13, %14, %15, %16, %17, %18, %19, %20, %21, %22 in 0 : vector<80x128xbf16>, vector<80x128xbf16>, vector<80x128xbf16>, vector<80x128xbf16>, vector<80x128xbf16>, vector<80x128xbf16>, vector<80x128xbf16>, vector<80x128xbf16>, vector<80x128xbf16>, vector<80x128xbf16>, vector<80x128xbf16>, vector<80x128xbf16>, vector<80x128xbf16>, vector<80x128xbf16>, vector<80x128xbf16>, vector<80x128xbf16> -> vector<1280x128xbf16>
    %29 = tpu.concatenate %23, %24, %25, %26, %27 in 0 : vector<80x128xbf16>, vector<80x128xbf16>, vector<80x128xbf16>, vector<80x128xbf16>, vector<80x128xbf16> -> vector<400x128xbf16>
    %30 = tpu.concatenate %28, %29 in 0 : vector<1280x128xbf16>, vector<400x128xbf16> -> vector<1680x128xbf16>
    %c0_5 = arith.constant 0 : index
    %c0_6 = arith.constant 0 : index
    %31 = vector.load %arg4[%c0_5, %c0_6] : memref<96x1680xbf16, #tpu.memory_space<vmem>>, vector<96x1680xbf16>
    %cst = arith.constant dense<0.000000e+00> : vector<96x128xf32>
    %32 = tpu.matmul %31, %30, %cst {dimension_numbers = #tpu.dot_dimension_numbers<[1], [0], [0], [1], [0, 0, 1, 1], [], []>} : vector<96x1680xbf16>, vector<1680x128xbf16>, vector<96x128xf32> -> vector<96x128xf32>
    %c0_7 = arith.constant 0 : index
    %c0_8 = arith.constant 0 : index
    %33 = vector.load %arg5[%c0_7, %c0_8] : memref<96x1xf32, #tpu.memory_space<vmem>>, vector<96x1xf32>
    %34 = vector.broadcast %33 : vector<96x1xf32> to vector<96x128xf32>
    %35 = arith.addf %32, %34 : vector<96x128xf32>
    %c0_9 = arith.constant 0 : index
    %c0_10 = arith.constant 0 : index
    %c0_11 = arith.constant 0 : index
    %36 = vector.load %arg6[%c0_9, %c0_10, %c0_11] : memref<1x96x128xf32, #tpu.memory_space<vmem>>, vector<1x96x128xf32>
    %37 = vector.shape_cast %36 : vector<1x96x128xf32> to vector<96x128xf32>
    %38 = vector.shape_cast %35 : vector<96x128xf32> to vector<1x96x128xf32>
    tpu.vector_store %arg6[%c0_9, %c0_10, %c0_11], %38 {strides = array<i32>} : memref<1x96x128xf32, #tpu.memory_space<vmem>>, vector<1x96x128xf32>,
    return
  }
  func.func @transform_0(%arg0: i32, %arg1: i32) -> (i32, i32, i32) {
    %c0_i32 = arith.constant 0 : i32
    %c0_i32_0 = arith.constant 0 : i32
    return %arg0, %c0_i32, %arg1 : i32, i32, i32
  }
  func.func @transform_1(%arg0: i32, %arg1: i32) -> (i32, i32, i32) {
    %c1_i32 = arith.constant 1 : i32
    %0 = arith.addi %arg1, %c1_i32 : i32
    %c1_i32_0 = arith.constant 1 : i32
    %1 = arith.muli %0, %c1_i32_0 : i32
    %c0_i32 = arith.constant 0 : i32
    %2 = arith.minsi %1, %c0_i32 : i32
    %c0_i32_1 = arith.constant 0 : i32
    %c0_i32_2 = arith.constant 0 : i32
    return %arg0, %c0_i32_1, %2 : i32, i32, i32
  }
  func.func @transform_2(%arg0: i32, %arg1: i32) -> (i32, i32) {
    %c0_i32 = arith.constant 0 : i32
    %c0_i32_0 = arith.constant 0 : i32
    %c0_i32_1 = arith.constant 0 : i32
    return %c0_i32, %c0_i32_0 : i32, i32
  }
  func.func @transform_3(%arg0: i32, %arg1: i32) -> (i32, i32) {
    %c0_i32 = arith.constant 0 : i32
    %c0_i32_0 = arith.constant 0 : i32
    %c0_i32_1 = arith.constant 0 : i32
    return %c0_i32, %c0_i32_0 : i32, i32
  }
  func.func @transform_4(%arg0: i32, %arg1: i32) -> (i32, i32, i32) {
    %c0_i32 = arith.constant 0 : i32
    %c0_i32_0 = arith.constant 0 : i32
    return %arg0, %c0_i32, %arg1 : i32, i32, i32
  }
}

</mosaic_0001>

<llo_original>
// kernel: tpu_custom_call.1
$region0: #{tpu_custom_call.1}
  #allocation0 [shape = 'u32[]', space=smem, size = 0x4, offset = 0x4, fixed_abs, tag = 'smem constant byte address 0x4 - core index']
  #allocation1 [shape = 'u32[72,128]{1,0:T(1,128)}', space=vmem, size = 0x9000, scoped, tag = 'internal scratch']
  %s0 = inlined_call_operand.hbm [shape: f32[2,80,128], index: 0, kind: input, shape index: {}]
  %s1 = inlined_call_operand.hbm [shape: f32[2,80,128], index: 1, kind: input, shape index: {}]
  %s2 = inlined_call_operand.hbm [shape: bf16[96,1680], index: 2, kind: input, shape index: {}]
  %s3 = inlined_call_operand.vmem [shape: f32[96,1], index: 3, kind: input, shape index: {}]
  %s4 = inlined_call_operand.hbm [shape: f32[2,96,128], index: 4, kind: output, shape index: {}]
  %s5 = sld [smem:[#allocation0]]
  $region61: #{tpu_custom_call.1} parent=0
    _
  %s7 = ssub.s32 1, %s5
  %s8 = scalar_select 0, %s7, %s5
  $region1: #{tpu_custom_call.1} parent=0
    #allocation2 [shape = 'u8[81920]{0}', space=vmem, size = 0x14000, scoped, tag = 'input window, operand 0']
    #allocation3 [shape = 's32[2]{0}', space=sflag, size = 0x8, scoped, tag = 'scoped memory for tpu_custom_call.1']
    #allocation4 [shape = 's32[2]{0}', space=sflag, size = 0x8, scoped, tag = 'scoped memory for tpu_custom_call.1']
    #allocation5 [shape = 'u8[81920]{0}', space=vmem, size = 0x14000, scoped, tag = 'input window, operand 1']
    #allocation6 [shape = 's32[2]{0}', space=sflag, size = 0x8, scoped, tag = 'scoped memory for tpu_custom_call.1']
    #allocation7 [shape = 'u8[344064]{0}', space=vmem, size = 0x54000, scoped, tag = 'input window, operand 2, single buffered']
    #allocation8 [shape = 'u8[98304]{0}', space=vmem, size = 0x18000, scoped, tag = 'output window, operand 0']
    %9 = vsyncpa [#allocation3], 0
    %s10 = scalar_lea.sflag [#allocation3], 1
    %11 = vsyncpa %s10, 0
    %12 = vsyncpa [#allocation6], 0
    %s13 = scalar_lea.sflag [#allocation6], 1
    %14 = vsyncpa %s13, 0
    %15 = vsyncpa [#allocation4], 0
    %s16 = scalar_lea.sflag [#allocation4], 1
    %17 = vsyncpa %s16, 0
    loop: start=0, step=1, limit=4
    $region2: #{tpu_custom_call.1} parent=1 // loop_pre_header
      _
    $region3: #{tpu_custom_call.1} parent=1 // loop_header
      %s19 = sphi 0, %s23
      %p20 = scmp.ge.s32.totalorder %s19, 4
      %s26 = sphi 0, %s38
      %s27 = sphi 0, %s34
      %s28 = sphi 0, %s26
      %s29 = sphi 0, %s27
      %s30 = sphi 0, %s28
      %s31 = sphi 0, %s29
      %s43 = sphi 0, %s45
      %s46 = sphi 0, %s43
      %s47 = sphi 0, %s46
      %s63 = sphi 0, %s47
      %s77 = sphi 0, %s79
      %s80 = sphi 0, %s77
      %s81 = sphi 0, %s80
      %s97 = sphi 0, %s81
      %s101 = sphi 0, %s101
      %s103 = sphi 0, %s101
      %s104 = sphi 0, %s103
      %s118 = sphi 0, %s104
      %s122 = sphi 0, %s122
      %s124 = sphi 0, %s122
      %s125 = sphi 0, %s124
      %s139 = sphi 0, %s125
      %s147 = sphi 0, %s149
      %s150 = sphi 0, %s147
      %s151 = sphi 0, %s150
      %s167 = sphi 0, %s151
    $region4: #{tpu_custom_call.1} parent=1 // loop_header_branch
      %22 = sbr.rel (%p20) target = $region8
    $region5: #{tpu_custom_call.1} parent=1 // loop_body
      %s24 = ssub.s32 %s19, 1
      %s25 = ssub.s32 %s19, 2
      %s32 = sadd.s32 1, %s27
      %p33 = scmp.ge.s32.totalorder %s32, 1
      %s34 = scalar_select %p33, 0, %s32
      %s35 = sadd.s32 1, %s26
      %s36 = scalar_select %p33, %s35, %s26
      %p37 = scmp.ge.s32.totalorder %s36, 2
      %s38 = scalar_select %p37, 0, %s36
      %s39 = ssub.s32 %s26, %s38
      %s40 = ssub.s32 %s27, %s34
      %s41 = sor.u32 %s39, %s40
      %p42 = scmp.eq.s32.totalorder %s41, 0
      %s44 = sadd.s32 %s43, 1
      %s45 = scalar_select %p42, %s43, %s44
      %p48 = pneg %p42
      %p49 = scmp.eq.s32.totalorder %s19, 1
      %p50 = por %p48, %p49
      %p51 = scmp.ne.s32.totalorder %s43, %s46
      %p52 = scmp.eq.s32.totalorder %s19, 0
      %p53 = por %p51, %p52
      %p54 = scmp.ne.s32.totalorder %s43, %s46
      %p55 = scmp.eq.s32.totalorder %s24, 1
      %p56 = por %p54, %p55
      %p57 = scmp.ne.s32.totalorder %s46, %s47
      %p58 = scmp.eq.s32.totalorder %s24, 0
      %p59 = por %p57, %p58
      %p60 = scmp.ne.s32.totalorder %s46, %s47
      %p61 = scmp.eq.s32.totalorder %s25, 1
      %p62 = por %p60, %p61
      %p64 = scmp.ne.s32.totalorder %s47, %s63
      %p65 = scmp.eq.s32.totalorder %s25, 0
      %p66 = por %p64, %p65
      %s67 = sadd.s32 %s27, 1
      %p68 = scmp.lt.s32.totalorder %s67, 0
      %s69 = scalar_select %p68, %s67, 0
      %s70 = sadd.s32 %s34, 1
      %p71 = scmp.lt.s32.totalorder %s70, 0
      %s72 = scalar_select %p71, %s70, 0
      %s73 = ssub.s32 %s26, %s38
      %s74 = ssub.s32 %s69, %s72
      %s75 = sor.u32 %s73, %s74
      %p76 = scmp.eq.s32.totalorder %s75, 0
      %s78 = sadd.s32 %s77, 1
      %s79 = scalar_select %p76, %s77, %s78
      %p82 = pneg %p76
      %p83 = scmp.eq.s32.totalorder %s19, 1
      %p84 = por %p82, %p83
      %p85 = scmp.ne.s32.totalorder %s77, %s80
      %p86 = scmp.eq.s32.totalorder %s19, 0
      %p87 = por %p85, %p86
      %p88 = scmp.ne.s32.totalorder %s77, %s80
      %p89 = scmp.eq.s32.totalorder %s24, 1
      %p90 = por %p88, %p89
      %p91 = scmp.ne.s32.totalorder %s80, %s81
      %p92 = scmp.eq.s32.totalorder %s24, 0
      %p93 = por %p91, %p92
      %p94 = scmp.ne.s32.totalorder %s80, %s81
      %p95 = scmp.eq.s32.totalorder %s25, 1
      %p96 = por %p94, %p95
      %p98 = scmp.ne.s32.totalorder %s81, %s97
      %p99 = scmp.eq.s32.totalorder %s25, 0
      %p100 = por %p98, %p99
      %s102 = sadd.s32 %s101, 1
      %p105 = scmp.eq.s32.totalorder %s19, 1
      %p106 = scmp.ne.s32.totalorder %s101, %s103
      %p107 = scmp.eq.s32.totalorder %s19, 0
      %p108 = por %p106, %p107
      %p109 = scmp.ne.s32.totalorder %s101, %s103
      %p110 = scmp.eq.s32.totalorder %s24, 1
      %p111 = por %p109, %p110
      %p112 = scmp.ne.s32.totalorder %s103, %s104
      %p113 = scmp.eq.s32.totalorder %s24, 0
      %p114 = por %p112, %p113
      %p115 = scmp.ne.s32.totalorder %s103, %s104
      %p116 = scmp.eq.s32.totalorder %s25, 1
      %p117 = por %p115, %p116
      %p119 = scmp.ne.s32.totalorder %s104, %s118
      %p120 = scmp.eq.s32.totalorder %s25, 0
      %p121 = por %p119, %p120
      %s123 = sadd.s32 %s122, 1
      %p126 = scmp.eq.s32.totalorder %s19, 1
      %p127 = scmp.ne.s32.totalorder %s122, %s124
      %p128 = scmp.eq.s32.totalorder %s19, 0
      %p129 = por %p127, %p128
      %p130 = scmp.ne.s32.totalorder %s122, %s124
      %p131 = scmp.eq.s32.totalorder %s24, 1
      %p132 = por %p130, %p131
      %p133 = scmp.ne.s32.totalorder %s124, %s125
      %p134 = scmp.eq.s32.totalorder %s24, 0
      %p135 = por %p133, %p134
      %p136 = scmp.ne.s32.totalorder %s124, %s125
      %p137 = scmp.eq.s32.totalorder %s25, 1
      %p138 = por %p136, %p137
      %p140 = scmp.ne.s32.totalorder %s125, %s139
      %p141 = scmp.eq.s32.totalorder %s25, 0
      %p142 = por %p140, %p141
      %s143 = ssub.s32 %s26, %s38
      %s144 = ssub.s32 %s27, %s34
      %s145 = sor.u32 %s143, %s144
      %p146 = scmp.eq.s32.totalorder %s145, 0
      %s148 = sadd.s32 %s147, 1
      %s149 = scalar_select %p146, %s147, %s148
      %p152 = pneg %p146
      %p153 = scmp.eq.s32.totalorder %s19, 1
      %p154 = por %p152, %p153
      %p155 = scmp.ne.s32.totalorder %s147, %s150
      %p156 = scmp.eq.s32.totalorder %s19, 0
      %p157 = por %p155, %p156
      %p158 = scmp.ne.s32.totalorder %s147, %s150
      %p159 = scmp.eq.s32.totalorder %s24, 1
      %p160 = por %p158, %p159
      %p161 = scmp.ne.s32.totalorder %s150, %s151
      %p162 = scmp.eq.s32.totalorder %s24, 0
      %p163 = por %p161, %p162
      %p164 = scmp.ne.s32.totalorder %s150, %s151
      %p165 = scmp.eq.s32.totalorder %s25, 1
      %p166 = por %p164, %p165
      %p168 = scmp.ne.s32.totalorder %s151, %s167
      %p169 = scmp.eq.s32.totalorder %s25, 0
      %p170 = por %p168, %p169
      %p171 = scmp.le.s32.totalorder 1, %s19
      %p172 = scmp.lt.s32.totalorder %s19, 3
      %p173 = pnand %p171, %p172
      %p174 = pneg %p173
      // Predicated region
      $region9: #{tpu_custom_call.1} parent=5 // pred_check
        _
      $region10: #{tpu_custom_call.1} parent=5 // pred_check_branch
        %176 = sbr.rel (%p173) target = $region12
      $region11: #{tpu_custom_call.1} parent=5 // pred_region
        %s177 = ssub.s32 %s19, 1
        // Predicated region
        $region13: #{tpu_custom_call.1} parent=11 // pred_check
          %p178 = pneg %p114
        $region14: #{tpu_custom_call.1} parent=11 // pred_check_branch
          %180 = sbr.rel (%p178) target = $region16
        $region15: #{tpu_custom_call.1} parent=11 // pred_region
          %182 = vsyncadd [#allocation6], 0
          %s183 = sshll.u32 %s2, 4
          %s184 = int_to_ptr.hbm [resolvable:$true] %s183
          %s185 = sshll.u32 [#allocation7], 4
          %s186 = int_to_ptr.vmem [resolvable:$true] %s185
          %191 = dma.hbm_to_vmem [thread:$0]  %s184, 10752, %s186, [#allocation6], 896, 896, 56
        $region16: #{tpu_custom_call.1} parent=11 // pred_fallthru
          _
        // Predicated region
        $region17: #{tpu_custom_call.1} parent=11 // pred_check
          %p192 = pneg %p135
        $region18: #{tpu_custom_call.1} parent=11 // pred_check_branch
          %194 = sbr.rel (%p192) target = $region20
        $region19: #{tpu_custom_call.1} parent=11 // pred_region
          _
        $region20: #{tpu_custom_call.1} parent=11 // pred_fallthru
          _
      $region12: #{tpu_custom_call.1} parent=5 // pred_fallthru
        _
      %p195 = scmp.lt.s32.totalorder %s19, 2
      // Predicated region
      $region21: #{tpu_custom_call.1} parent=5 // pred_check
        %p196 = pneg %p195
      $region22: #{tpu_custom_call.1} parent=5 // pred_check_branch
        %198 = sbr.rel (%p196) target = $region24
      $region23: #{tpu_custom_call.1} parent=5 // pred_region
        // Predicated region
        $region25: #{tpu_custom_call.1} parent=23 // pred_check
          %p199 = pneg %p53
        $region26: #{tpu_custom_call.1} parent=23 // pred_check_branch
          %201 = sbr.rel (%p199) target = $region28
        $region27: #{tpu_custom_call.1} parent=23 // pred_region
          %s202 = sand.u32 %s43, 1
          %s203 = scalar_lea.sflag [#allocation3], %s202
          %s204 = sand.u32 %s43, 1
          %s205 = smul.addr %s204, 80
          %s206 = scalar_lea.vmem [#allocation2], %s205
          %208 = vsyncadd %s203, 0
          %s209 = smul.addr %s26, 10
          %s210 = sadd.s32 %s27, %s209
          %s211 = smul.addr %s210, 8
          %s212 = scalar_lea.hbm %s0, %s211
          %s213 = sshll.u32 %s212, 4
          %s214 = int_to_ptr.hbm [resolvable:$true] %s213
          %s215 = sshll.u32 %s206, 4
          %s216 = int_to_ptr.vmem [resolvable:$true] %s215
          %221 = dma.hbm_to_vmem [thread:$0]  %s214, 1280, %s216, %s203, 128, 128, 8
        $region28: #{tpu_custom_call.1} parent=23 // pred_fallthru
          _
        // Predicated region
        $region29: #{tpu_custom_call.1} parent=23 // pred_check
          %p222 = pneg %p87
        $region30: #{tpu_custom_call.1} parent=23 // pred_check_branch
          %224 = sbr.rel (%p222) target = $region32
        $region31: #{tpu_custom_call.1} parent=23 // pred_region
          %s225 = sand.u32 %s19, 1
          %s226 = scalar_lea.sflag [#allocation6], %s225
          %s227 = sand.u32 %s77, 1
          %s228 = smul.addr %s227, 80
          %s229 = scalar_lea.vmem [#allocation5], %s228
          %s230 = sadd.s32 %s27, 1
          %p231 = scmp.lt.s32.totalorder %s230, 0
          %s232 = scalar_select %p231, %s230, 0
          %234 = vsyncadd %s226, 0
          %s235 = smul.addr %s26, 10
          %s236 = sadd.s32 %s232, %s235
          %s237 = smul.addr %s236, 8
          %s238 = scalar_lea.hbm %s1, %s237
          %s239 = sshll.u32 %s238, 4
          %s240 = int_to_ptr.hbm [resolvable:$true] %s239
          %s241 = sshll.u32 %s229, 4
          %s242 = int_to_ptr.vmem [resolvable:$true] %s241
          %247 = dma.hbm_to_vmem [thread:$0]  %s240, 1280, %s242, %s226, 128, 128, 8
        $region32: #{tpu_custom_call.1} parent=23 // pred_fallthru
          _
      $region24: #{tpu_custom_call.1} parent=5 // pred_fallthru
        _
      %p248 = scmp.le.s32.totalorder 1, %s19
      %p249 = scmp.lt.s32.totalorder %s19, 3
      %p250 = pnand %p248, %p249
      %p251 = pneg %p250
      // Predicated region
      $region33: #{tpu_custom_call.1} parent=5 // pred_check
        _
      $region34: #{tpu_custom_call.1} parent=5 // pred_check_branch
        %253 = sbr.rel (%p250) target = $region36
      $region35: #{tpu_custom_call.1} parent=5 // pred_region
        %s254 = ssub.s32 %s19, 1
        %s255 = sand.u32 %s46, 1
        %s256 = scalar_lea.sflag [#allocation3], %s255
        %s257 = sand.u32 %s46, 1
        %s258 = smul.addr %s257, 80
        %s259 = scalar_lea.vmem [#allocation2], %s258
        // Predicated region
        $region37: #{tpu_custom_call.1} parent=35 // pred_check
          %p260 = pneg %p59
        $region38: #{tpu_custom_call.1} parent=35 // pred_check_branch
          %262 = sbr.rel (%p260) target = $region40
        $region39: #{tpu_custom_call.1} parent=35 // pred_region
          %264 = dma.done %s256, 1280
        $region40: #{tpu_custom_call.1} parent=35 // pred_fallthru
          _
        %s265 = sand.u32 %s24, 1
        %s266 = scalar_lea.sflag [#allocation6], %s265
        %s267 = sand.u32 %s80, 1
        %s268 = smul.addr %s267, 80
        %s269 = scalar_lea.vmem [#allocation5], %s268
        // Predicated region
        $region41: #{tpu_custom_call.1} parent=35 // pred_check
          %p270 = pneg %p93
        $region42: #{tpu_custom_call.1} parent=35 // pred_check_branch
          %272 = sbr.rel (%p270) target = $region44
        $region43: #{tpu_custom_call.1} parent=35 // pred_region
          %274 = dma.done %s266, 1280
        $region44: #{tpu_custom_call.1} parent=35 // pred_fallthru
          _
        // Predicated region
        $region45: #{tpu_custom_call.1} parent=35 // pred_check
          %p275 = pneg %p114
        $region46: #{tpu_custom_call.1} parent=35 // pred_check_branch
          %277 = sbr.rel (%p275) target = $region48
        $region47: #{tpu_custom_call.1} parent=35 // pred_region
          %279 = dma.done [#allocation6], 10752
        $region48: #{tpu_custom_call.1} parent=35 // pred_fallthru
          _
        %s280 = sand.u32 %s46, 1
        %s281 = scalar_lea.sflag [#allocation3], %s280
        %s282 = sand.u32 %s46, 1
        %s283 = smul.addr %s282, 80
        %s284 = scalar_lea.vmem [#allocation2], %s283
        %p285 = pneg %p59
        %p286 = pneg %p56
        %s287 = sand.u32 %s24, 1
        %s288 = scalar_lea.sflag [#allocation6], %s287
        %s289 = sand.u32 %s80, 1
        %s290 = smul.addr %s289, 80
        %s291 = scalar_lea.vmem [#allocation5], %s290
        %p292 = pneg %p93
        %p293 = pneg %p90
        %p294 = pneg %p114
        %p295 = pneg %p111
        %p296 = pneg %p135
        %p297 = pneg %p132
        %p298 = pneg %p163
        %p299 = pneg %p160
        %s300 = sand.u32 %s150, 1
        %s301 = scalar_lea.sflag [#allocation4], %s300
        %s302 = sand.u32 %s150, 1
        %s303 = smul.addr %s302, 96
        %s304 = scalar_lea.vmem [#allocation8], %s303
        %s305 = sadd.s32 %s29, 1
        %p306 = scmp.lt.s32.totalorder %s305, 0
        %s307 = scalar_select %p306, %s305, 0
        %v309 = vld [vmem:[%s259] sm:$0xff]
        %v310 = vld [vmem:[%s259 + $0x8] sm:$0xff]
        %v311 = vld [vmem:[%s259 + $0x10] sm:$0xff]
        %v312 = vld [vmem:[%s259 + $0x18] sm:$0xff]
        %v313 = vld [vmem:[%s259 + $0x20] sm:$0xff]
        %v314 = vld [vmem:[%s259 + $0x28] sm:$0xff]
        %v315 = vld [vmem:[%s259 + $0x30] sm:$0xff]
        %v316 = vld [vmem:[%s259 + $0x38] sm:$0xff]
        %v317 = vld [vmem:[%s259 + $0x40] sm:$0xff]
        %v318 = vld [vmem:[%s259 + $0x48] sm:$0xff]
        %v319 = vpack.c.bf16 %v309, %v309
        %v320 = vpack.c.bf16 %v310, %v310
        %v321 = vpack.c.bf16 %v311, %v311
        %v322 = vpack.c.bf16 %v312, %v312
        %v323 = vpack.c.bf16 %v313, %v313
        %v324 = vpack.c.bf16 %v314, %v314
        %v325 = vpack.c.bf16 %v315, %v315
        %v326 = vpack.c.bf16 %v316, %v316
        %v327 = vpack.c.bf16 %v317, %v317
        %v328 = vpack.c.bf16 %v318, %v318
        %v329 = vld [vmem:[%s269] sm:$0xff]
        %v330 = vld [vmem:[%s269 + $0x8] sm:$0xff]
        %v331 = vld [vmem:[%s269 + $0x10] sm:$0xff]
        %v332 = vld [vmem:[%s269 + $0x18] sm:$0xff]
        %v333 = vld [vmem:[%s269 + $0x20] sm:$0xff]
        %v334 = vld [vmem:[%s269 + $0x28] sm:$0xff]
        %v335 = vld [vmem:[%s269 + $0x30] sm:$0xff]
        %v336 = vld [vmem:[%s269 + $0x38] sm:$0xff]
        %v337 = vld [vmem:[%s269 + $0x40] sm:$0xff]
        %v338 = vld [vmem:[%s269 + $0x48] sm:$0xff]
        %v339 = vpack.c.bf16 %v329, %v329
        %v340 = vpack.c.bf16 %v330, %v330
        %v341 = vpack.c.bf16 %v331, %v331
        %v342 = vpack.c.bf16 %v332, %v332
        %v343 = vpack.c.bf16 %v333, %v333
        %v344 = vpack.c.bf16 %v334, %v334
        %v345 = vpack.c.bf16 %v335, %v335
        %v346 = vpack.c.bf16 %v336, %v336
        %v347 = vpack.c.bf16 %v337, %v337
        %v348 = vpack.c.bf16 %v338, %v338
        %v359 = vunpack.c.l.b16 %v319
        %v360 = vunpack.c.l.b16 %v320
        %v361 = vunpack.c.l.b16 %v321
        %v362 = vunpack.c.l.b16 %v322
        %v363 = vunpack.c.l.b16 %v323
        %v364 = vunpack.c.l.b16 %v324
        %v365 = vunpack.c.l.b16 %v325
        %v366 = vunpack.c.l.b16 %v326
        %v367 = vunpack.c.l.b16 %v327
        %v368 = vunpack.c.l.b16 %v328
        %v369 = vpack.c.b16 %v360, %v359
        %v370 = vpack.c.b16 %v362, %v361
        %v371 = vpack.c.b16 %v364, %v363
        %v372 = vpack.c.b16 %v366, %v365
        %v373 = vpack.c.b16 %v368, %v367
        %v389 = vunpack.c.l.b16 %v339
        %v390 = vunpack.c.l.b16 %v340
        %v391 = vunpack.c.l.b16 %v341
        %v392 = vunpack.c.l.b16 %v342
        %v393 = vunpack.c.l.b16 %v343
        %v394 = vunpack.c.l.b16 %v344
        %v395 = vunpack.c.l.b16 %v345
        %v396 = vunpack.c.l.b16 %v346
        %v397 = vunpack.c.l.b16 %v347
        %v398 = vunpack.c.l.b16 %v348
        %v399 = vpack.c.b16 %v390, %v389
        %v400 = vpack.c.b16 %v392, %v391
        %v401 = vpack.c.b16 %v394, %v393
        %v402 = vpack.c.b16 %v396, %v395
        %v403 = vpack.c.b16 %v398, %v397
        %404 = vrot.lane.b32.xlu0 %v369, 127
        %v405 = vpop.permute.xlu0 %404
        %406 = vrot.lane.b32.xlu0 %v399, 127
        %v407 = vpop.permute.xlu0 %406
        %408 = vrot.lane.b32.xlu0 %v370, 127
        %v409 = vpop.permute.xlu0 %408
        %410 = vrot.lane.b32.xlu0 %v400, 127
        %v411 = vpop.permute.xlu0 %410
        %412 = vrot.lane.b32.xlu0 %v371, 127
        %v413 = vpop.permute.xlu0 %412
        %414 = vrot.lane.b32.xlu0 %v401, 127
        %v415 = vpop.permute.xlu0 %414
        %416 = vrot.lane.b32.xlu0 %v372, 127
        %v417 = vpop.permute.xlu0 %416
        %418 = vrot.lane.b32.xlu0 %v402, 127
        %v419 = vpop.permute.xlu0 %418
        %420 = vrot.lane.b32.xlu0 %v373, 127
        %v421 = vpop.permute.xlu0 %420
        %422 = vrot.lane.b32.xlu0 %v403, 127
        %v423 = vpop.permute.xlu0 %422
        %vm424 = vcmask 1039360
        %v425 = vsel %vm424, %v405, %v407
        %v426 = vsel %vm424, %v409, %v411
        %v427 = vsel %vm424, %v413, %v415
        %v428 = vsel %vm424, %v417, %v419
        %v429 = vsel %vm424, %v421, %v423
        %435 = vrot.lane.b32.xlu0 %v369, 126
        %v436 = vpop.permute.xlu0 %435
        %437 = vrot.lane.b32.xlu0 %v399, 126
        %v438 = vpop.permute.xlu0 %437
        %439 = vrot.lane.b32.xlu0 %v370, 126
        %v440 = vpop.permute.xlu0 %439
        %441 = vrot.lane.b32.xlu0 %v400, 126
        %v442 = vpop.permute.xlu0 %441
        %443 = vrot.lane.b32.xlu0 %v371, 126
        %v444 = vpop.permute.xlu0 %443
        %445 = vrot.lane.b32.xlu0 %v401, 126
        %v446 = vpop.permute.xlu0 %445
        %447 = vrot.lane.b32.xlu0 %v372, 126
        %v448 = vpop.permute.xlu0 %447
        %449 = vrot.lane.b32.xlu0 %v402, 126
        %v450 = vpop.permute.xlu0 %449
        %451 = vrot.lane.b32.xlu0 %v373, 126
        %v452 = vpop.permute.xlu0 %451
        %453 = vrot.lane.b32.xlu0 %v403, 126
        %v454 = vpop.permute.xlu0 %453
        %vm455 = vcmask 1031168
        %v456 = vsel %vm455, %v436, %v438
        %v457 = vsel %vm455, %v440, %v442
        %v458 = vsel %vm455, %v444, %v446
        %v459 = vsel %vm455, %v448, %v450
        %v460 = vsel %vm455, %v452, %v454
        %466 = vrot.lane.b32.xlu0 %v369, 125
        %v467 = vpop.permute.xlu0 %466
        %468 = vrot.lane.b32.xlu0 %v399, 125
        %v469 = vpop.permute.xlu0 %468
        %470 = vrot.lane.b32.xlu0 %v370, 125
        %v471 = vpop.permute.xlu0 %470
        %472 = vrot.lane.b32.xlu0 %v400, 125
        %v473 = vpop.permute.xlu0 %472
        %474 = vrot.lane.b32.xlu0 %v371, 125
        %v475 = vpop.permute.xlu0 %474
        %476 = vrot.lane.b32.xlu0 %v401, 125
        %v477 = vpop.permute.xlu0 %476
        %478 = vrot.lane.b32.xlu0 %v372, 125
        %v479 = vpop.permute.xlu0 %478
        %480 = vrot.lane.b32.xlu0 %v402, 125
        %v481 = vpop.permute.xlu0 %480
        %482 = vrot.lane.b32.xlu0 %v373, 125
        %v483 = vpop.permute.xlu0 %482
        %484 = vrot.lane.b32.xlu0 %v403, 125
        %v485 = vpop.permute.xlu0 %484
        %vm486 = vcmask 1022976
        %v487 = vsel %vm486, %v467, %v469
        %v488 = vsel %vm486, %v471, %v473
        %v489 = vsel %vm486, %v475, %v477
        %v490 = vsel %vm486, %v479, %v481
        %v491 = vsel %vm486, %v483, %v485
        %497 = vrot.lane.b32.xlu0 %v369, 124
        %v498 = vpop.permute.xlu0 %497
        %499 = vrot.lane.b32.xlu0 %v399, 124
        %v500 = vpop.permute.xlu0 %499
        %501 = vrot.lane.b32.xlu0 %v370, 124
        %v502 = vpop.permute.xlu0 %501
        %503 = vrot.lane.b32.xlu0 %v400, 124
        %v504 = vpop.permute.xlu0 %503
        %505 = vrot.lane.b32.xlu0 %v371, 124
        %v506 = vpop.permute.xlu0 %505
        %507 = vrot.lane.b32.xlu0 %v401, 124
        %v508 = vpop.permute.xlu0 %507
        %509 = vrot.lane.b32.xlu0 %v372, 124
        %v510 = vpop.permute.xlu0 %509
        %511 = vrot.lane.b32.xlu0 %v402, 124
        %v512 = vpop.permute.xlu0 %511
        %513 = vrot.lane.b32.xlu0 %v373, 124
        %v514 = vpop.permute.xlu0 %513
        %515 = vrot.lane.b32.xlu0 %v403, 124
        %v516 = vpop.permute.xlu0 %515
        %vm517 = vcmask 1014784
        %v518 = vsel %vm517, %v498, %v500
        %v519 = vsel %vm517, %v502, %v504
        %v520 = vsel %vm517, %v506, %v508
        %v521 = vsel %vm517, %v510, %v512
        %v522 = vsel %vm517, %v514, %v516
        %528 = vrot.lane.b32.xlu0 %v369, 123
        %v529 = vpop.permute.xlu0 %528
        %530 = vrot.lane.b32.xlu0 %v399, 123
        %v531 = vpop.permute.xlu0 %530
        %532 = vrot.lane.b32.xlu0 %v370, 123
        %v533 = vpop.permute.xlu0 %532
        %534 = vrot.lane.b32.xlu0 %v400, 123
        %v535 = vpop.permute.xlu0 %534
        %536 = vrot.lane.b32.xlu0 %v371, 123
        %v537 = vpop.permute.xlu0 %536
        %538 = vrot.lane.b32.xlu0 %v401, 123
        %v539 = vpop.permute.xlu0 %538
        %540 = vrot.lane.b32.xlu0 %v372, 123
        %v541 = vpop.permute.xlu0 %540
        %542 = vrot.lane.b32.xlu0 %v402, 123
        %v543 = vpop.permute.xlu0 %542
        %544 = vrot.lane.b32.xlu0 %v373, 123
        %v545 = vpop.permute.xlu0 %544
        %546 = vrot.lane.b32.xlu0 %v403, 123
        %v547 = vpop.permute.xlu0 %546
        %vm548 = vcmask 1006592
        %v549 = vsel %vm548, %v529, %v531
        %v550 = vsel %vm548, %v533, %v535
        %v551 = vsel %vm548, %v537, %v539
        %v552 = vsel %vm548, %v541, %v543
        %v553 = vsel %vm548, %v545, %v547
        %559 = vrot.lane.b32.xlu0 %v369, 122
        %v560 = vpop.permute.xlu0 %559
        %561 = vrot.lane.b32.xlu0 %v399, 122
        %v562 = vpop.permute.xlu0 %561
        %563 = vrot.lane.b32.xlu0 %v370, 122
        %v564 = vpop.permute.xlu0 %563
        %565 = vrot.lane.b32.xlu0 %v400, 122
        %v566 = vpop.permute.xlu0 %565
        %567 = vrot.lane.b32.xlu0 %v371, 122
        %v568 = vpop.permute.xlu0 %567
        %569 = vrot.lane.b32.xlu0 %v401, 122
        %v570 = vpop.permute.xlu0 %569
        %571 = vrot.lane.b32.xlu0 %v372, 122
        %v572 = vpop.permute.xlu0 %571
        %573 = vrot.lane.b32.xlu0 %v402, 122
        %v574 = vpop.permute.xlu0 %573
        %575 = vrot.lane.b32.xlu0 %v373, 122
        %v576 = vpop.permute.xlu0 %575
        %577 = vrot.lane.b32.xlu0 %v403, 122
        %v578 = vpop.permute.xlu0 %577
        %vm579 = vcmask 998400
        %v580 = vsel %vm579, %v560, %v562
        %v581 = vsel %vm579, %v564, %v566
        %v582 = vsel %vm579, %v568, %v570
        %v583 = vsel %vm579, %v572, %v574
        %v584 = vsel %vm579, %v576, %v578
        %590 = vrot.lane.b32.xlu0 %v369, 121
        %v591 = vpop.permute.xlu0 %590
        %592 = vrot.lane.b32.xlu0 %v399, 121
        %v593 = vpop.permute.xlu0 %592
        %594 = vrot.lane.b32.xlu0 %v370, 121
        %v595 = vpop.permute.xlu0 %594
        %596 = vrot.lane.b32.xlu0 %v400, 121
        %v597 = vpop.permute.xlu0 %596
        %598 = vrot.lane.b32.xlu0 %v371, 121
        %v599 = vpop.permute.xlu0 %598
        %600 = vrot.lane.b32.xlu0 %v401, 121
        %v601 = vpop.permute.xlu0 %600
        %602 = vrot.lane.b32.xlu0 %v372, 121
        %v603 = vpop.permute.xlu0 %602
        %604 = vrot.lane.b32.xlu0 %v402, 121
        %v605 = vpop.permute.xlu0 %604
        %606 = vrot.lane.b32.xlu0 %v373, 121
        %v607 = vpop.permute.xlu0 %606
        %608 = vrot.lane.b32.xlu0 %v403, 121
        %v609 = vpop.permute.xlu0 %608
        %vm610 = vcmask 990208
        %v611 = vsel %vm610, %v591, %v593
        %v612 = vsel %vm610, %v595, %v597
        %v613 = vsel %vm610, %v599, %v601
        %v614 = vsel %vm610, %v603, %v605
        %v615 = vsel %vm610, %v607, %v609
        %621 = vrot.lane.b32.xlu0 %v369, 120
        %v622 = vpop.permute.xlu0 %621
        %623 = vrot.lane.b32.xlu0 %v399, 120
        %v624 = vpop.permute.xlu0 %623
        %625 = vrot.lane.b32.xlu0 %v370, 120
        %v626 = vpop.permute.xlu0 %625
        %627 = vrot.lane.b32.xlu0 %v400, 120
        %v628 = vpop.permute.xlu0 %627
        %629 = vrot.lane.b32.xlu0 %v371, 120
        %v630 = vpop.permute.xlu0 %629
        %631 = vrot.lane.b32.xlu0 %v401, 120
        %v632 = vpop.permute.xlu0 %631
        %633 = vrot.lane.b32.xlu0 %v372, 120
        %v634 = vpop.permute.xlu0 %633
        %635 = vrot.lane.b32.xlu0 %v402, 120
        %v636 = vpop.permute.xlu0 %635
        %637 = vrot.lane.b32.xlu0 %v373, 120
        %v638 = vpop.permute.xlu0 %637
        %639 = vrot.lane.b32.xlu0 %v403, 120
        %v640 = vpop.permute.xlu0 %639
        %vm641 = vcmask 982016
        %v642 = vsel %vm641, %v622, %v624
        %v643 = vsel %vm641, %v626, %v628
        %v644 = vsel %vm641, %v630, %v632
        %v645 = vsel %vm641, %v634, %v636
        %v646 = vsel %vm641, %v638, %v640
        %652 = vrot.lane.b32.xlu0 %v369, 119
        %v653 = vpop.permute.xlu0 %652
        %654 = vrot.lane.b32.xlu0 %v399, 119
        %v655 = vpop.permute.xlu0 %654
        %656 = vrot.lane.b32.xlu0 %v370, 119
        %v657 = vpop.permute.xlu0 %656
        %658 = vrot.lane.b32.xlu0 %v400, 119
        %v659 = vpop.permute.xlu0 %658
        %660 = vrot.lane.b32.xlu0 %v371, 119
        %v661 = vpop.permute.xlu0 %660
        %662 = vrot.lane.b32.xlu0 %v401, 119
        %v663 = vpop.permute.xlu0 %662
        %664 = vrot.lane.b32.xlu0 %v372, 119
        %v665 = vpop.permute.xlu0 %664
        %666 = vrot.lane.b32.xlu0 %v402, 119
        %v667 = vpop.permute.xlu0 %666
        %668 = vrot.lane.b32.xlu0 %v373, 119
        %v669 = vpop.permute.xlu0 %668
        %670 = vrot.lane.b32.xlu0 %v403, 119
        %v671 = vpop.permute.xlu0 %670
        %vm672 = vcmask 973824
        %v673 = vsel %vm672, %v653, %v655
        %v674 = vsel %vm672, %v657, %v659
        %v675 = vsel %vm672, %v661, %v663
        %v676 = vsel %vm672, %v665, %v667
        %v677 = vsel %vm672, %v669, %v671
        %683 = vrot.lane.b32.xlu0 %v369, 118
        %v684 = vpop.permute.xlu0 %683
        %685 = vrot.lane.b32.xlu0 %v399, 118
        %v686 = vpop.permute.xlu0 %685
        %687 = vrot.lane.b32.xlu0 %v370, 118
        %v688 = vpop.permute.xlu0 %687
        %689 = vrot.lane.b32.xlu0 %v400, 118
        %v690 = vpop.permute.xlu0 %689
        %691 = vrot.lane.b32.xlu0 %v371, 118
        %v692 = vpop.permute.xlu0 %691
        %693 = vrot.lane.b32.xlu0 %v401, 118
        %v694 = vpop.permute.xlu0 %693
        %695 = vrot.lane.b32.xlu0 %v372, 118
        %v696 = vpop.permute.xlu0 %695
        %697 = vrot.lane.b32.xlu0 %v402, 118
        %v698 = vpop.permute.xlu0 %697
        %699 = vrot.lane.b32.xlu0 %v373, 118
        %v700 = vpop.permute.xlu0 %699
        %701 = vrot.lane.b32.xlu0 %v403, 118
        %v702 = vpop.permute.xlu0 %701
        %vm703 = vcmask 965632
        %v704 = vsel %vm703, %v684, %v686
        %v705 = vsel %vm703, %v688, %v690
        %v706 = vsel %vm703, %v692, %v694
        %v707 = vsel %vm703, %v696, %v698
        %v708 = vsel %vm703, %v700, %v702
        %714 = vrot.lane.b32.xlu0 %v369, 117
        %v715 = vpop.permute.xlu0 %714
        %716 = vrot.lane.b32.xlu0 %v399, 117
        %v717 = vpop.permute.xlu0 %716
        %718 = vrot.lane.b32.xlu0 %v370, 117
        %v719 = vpop.permute.xlu0 %718
        %720 = vrot.lane.b32.xlu0 %v400, 117
        %v721 = vpop.permute.xlu0 %720
        %722 = vrot.lane.b32.xlu0 %v371, 117
        %v723 = vpop.permute.xlu0 %722
        %724 = vrot.lane.b32.xlu0 %v401, 117
        %v725 = vpop.permute.xlu0 %724
        %726 = vrot.lane.b32.xlu0 %v372, 117
        %v727 = vpop.permute.xlu0 %726
        %728 = vrot.lane.b32.xlu0 %v402, 117
        %v729 = vpop.permute.xlu0 %728
        %730 = vrot.lane.b32.xlu0 %v373, 117
        %v731 = vpop.permute.xlu0 %730
        %732 = vrot.lane.b32.xlu0 %v403, 117
        %v733 = vpop.permute.xlu0 %732
        %vm734 = vcmask 957440
        %v735 = vsel %vm734, %v715, %v717
        %v736 = vsel %vm734, %v719, %v721
        %v737 = vsel %vm734, %v723, %v725
        %v738 = vsel %vm734, %v727, %v729
        %v739 = vsel %vm734, %v731, %v733
        %745 = vrot.lane.b32.xlu0 %v369, 116
        %v746 = vpop.permute.xlu0 %745
        %747 = vrot.lane.b32.xlu0 %v399, 116
        %v748 = vpop.permute.xlu0 %747
        %749 = vrot.lane.b32.xlu0 %v370, 116
        %v750 = vpop.permute.xlu0 %749
        %751 = vrot.lane.b32.xlu0 %v400, 116
        %v752 = vpop.permute.xlu0 %751
        %753 = vrot.lane.b32.xlu0 %v371, 116
        %v754 = vpop.permute.xlu0 %753
        %755 = vrot.lane.b32.xlu0 %v401, 116
        %v756 = vpop.permute.xlu0 %755
        %757 = vrot.lane.b32.xlu0 %v372, 116
        %v758 = vpop.permute.xlu0 %757
        %759 = vrot.lane.b32.xlu0 %v402, 116
        %v760 = vpop.permute.xlu0 %759
        %761 = vrot.lane.b32.xlu0 %v373, 116
        %v762 = vpop.permute.xlu0 %761
        %763 = vrot.lane.b32.xlu0 %v403, 116
        %v764 = vpop.permute.xlu0 %763
        %vm765 = vcmask 949248
        %v766 = vsel %vm765, %v746, %v748
        %v767 = vsel %vm765, %v750, %v752
        %v768 = vsel %vm765, %v754, %v756
        %v769 = vsel %vm765, %v758, %v760
        %v770 = vsel %vm765, %v762, %v764
        %776 = vrot.lane.b32.xlu0 %v369, 115
        %v777 = vpop.permute.xlu0 %776
        %778 = vrot.lane.b32.xlu0 %v399, 115
        %v779 = vpop.permute.xlu0 %778
        %780 = vrot.lane.b32.xlu0 %v370, 115
        %v781 = vpop.permute.xlu0 %780
        %782 = vrot.lane.b32.xlu0 %v400, 115
        %v783 = vpop.permute.xlu0 %782
        %784 = vrot.lane.b32.xlu0 %v371, 115
        %v785 = vpop.permute.xlu0 %784
        %786 = vrot.lane.b32.xlu0 %v401, 115
        %v787 = vpop.permute.xlu0 %786
        %788 = vrot.lane.b32.xlu0 %v372, 115
        %v789 = vpop.permute.xlu0 %788
        %790 = vrot.lane.b32.xlu0 %v402, 115
        %v791 = vpop.permute.xlu0 %790
        %792 = vrot.lane.b32.xlu0 %v373, 115
        %v793 = vpop.permute.xlu0 %792
        %794 = vrot.lane.b32.xlu0 %v403, 115
        %v795 = vpop.permute.xlu0 %794
        %vm796 = vcmask 941056
        %v797 = vsel %vm796, %v777, %v779
        %v798 = vsel %vm796, %v781, %v783
        %v799 = vsel %vm796, %v785, %v787
        %v800 = vsel %vm796, %v789, %v791
        %v801 = vsel %vm796, %v793, %v795
        %807 = vrot.lane.b32.xlu0 %v369, 114
        %v808 = vpop.permute.xlu0 %807
        %809 = vrot.lane.b32.xlu0 %v399, 114
        %v810 = vpop.permute.xlu0 %809
        %811 = vrot.lane.b32.xlu0 %v370, 114
        %v812 = vpop.permute.xlu0 %811
        %813 = vrot.lane.b32.xlu0 %v400, 114
        %v814 = vpop.permute.xlu0 %813
        %815 = vrot.lane.b32.xlu0 %v371, 114
        %v816 = vpop.permute.xlu0 %815
        %817 = vrot.lane.b32.xlu0 %v401, 114
        %v818 = vpop.permute.xlu0 %817
        %819 = vrot.lane.b32.xlu0 %v372, 114
        %v820 = vpop.permute.xlu0 %819
        %821 = vrot.lane.b32.xlu0 %v402, 114
        %v822 = vpop.permute.xlu0 %821
        %823 = vrot.lane.b32.xlu0 %v373, 114
        %v824 = vpop.permute.xlu0 %823
        %825 = vrot.lane.b32.xlu0 %v403, 114
        %v826 = vpop.permute.xlu0 %825
        %vm827 = vcmask 932864
        %v828 = vsel %vm827, %v808, %v810
        %v829 = vsel %vm827, %v812, %v814
        %v830 = vsel %vm827, %v816, %v818
        %v831 = vsel %vm827, %v820, %v822
        %v832 = vsel %vm827, %v824, %v826
        %838 = vrot.lane.b32.xlu0 %v369, 113
        %v839 = vpop.permute.xlu0 %838
        %840 = vrot.lane.b32.xlu0 %v399, 113
        %v841 = vpop.permute.xlu0 %840
        %842 = vrot.lane.b32.xlu0 %v370, 113
        %v843 = vpop.permute.xlu0 %842
        %844 = vrot.lane.b32.xlu0 %v400, 113
        %v845 = vpop.permute.xlu0 %844
        %846 = vrot.lane.b32.xlu0 %v371, 113
        %v847 = vpop.permute.xlu0 %846
        %848 = vrot.lane.b32.xlu0 %v401, 113
        %v849 = vpop.permute.xlu0 %848
        %850 = vrot.lane.b32.xlu0 %v372, 113
        %v851 = vpop.permute.xlu0 %850
        %852 = vrot.lane.b32.xlu0 %v402, 113
        %v853 = vpop.permute.xlu0 %852
        %854 = vrot.lane.b32.xlu0 %v373, 113
        %v855 = vpop.permute.xlu0 %854
        %856 = vrot.lane.b32.xlu0 %v403, 113
        %v857 = vpop.permute.xlu0 %856
        %vm858 = vcmask 924672
        %v859 = vsel %vm858, %v839, %v841
        %v860 = vsel %vm858, %v843, %v845
        %v861 = vsel %vm858, %v847, %v849
        %v862 = vsel %vm858, %v851, %v853
        %v863 = vsel %vm858, %v855, %v857
        %869 = vrot.lane.b32.xlu0 %v369, 112
        %v870 = vpop.permute.xlu0 %869
        %871 = vrot.lane.b32.xlu0 %v399, 112
        %v872 = vpop.permute.xlu0 %871
        %873 = vrot.lane.b32.xlu0 %v370, 112
        %v874 = vpop.permute.xlu0 %873
        %875 = vrot.lane.b32.xlu0 %v400, 112
        %v876 = vpop.permute.xlu0 %875
        %877 = vrot.lane.b32.xlu0 %v371, 112
        %v878 = vpop.permute.xlu0 %877
        %879 = vrot.lane.b32.xlu0 %v401, 112
        %v880 = vpop.permute.xlu0 %879
        %881 = vrot.lane.b32.xlu0 %v372, 112
        %v882 = vpop.permute.xlu0 %881
        %883 = vrot.lane.b32.xlu0 %v402, 112
        %v884 = vpop.permute.xlu0 %883
        %885 = vrot.lane.b32.xlu0 %v373, 112
        %v886 = vpop.permute.xlu0 %885
        %887 = vrot.lane.b32.xlu0 %v403, 112
        %v888 = vpop.permute.xlu0 %887
        %889 = vrot.lane.b32.xlu0 %v425, 112
        %v890 = vpop.permute.xlu0 %889
        %891 = vrot.lane.b32.xlu0 %v407, 112
        %v892 = vpop.permute.xlu0 %891
        %893 = vrot.lane.b32.xlu0 %v426, 112
        %v894 = vpop.permute.xlu0 %893
        %895 = vrot.lane.b32.xlu0 %v411, 112
        %v896 = vpop.permute.xlu0 %895
        %897 = vrot.lane.b32.xlu0 %v427, 112
        %v898 = vpop.permute.xlu0 %897
        %899 = vrot.lane.b32.xlu0 %v415, 112
        %v900 = vpop.permute.xlu0 %899
        %901 = vrot.lane.b32.xlu0 %v428, 112
        %v902 = vpop.permute.xlu0 %901
        %903 = vrot.lane.b32.xlu0 %v419, 112
        %v904 = vpop.permute.xlu0 %903
        %905 = vrot.lane.b32.xlu0 %v429, 112
        %v906 = vpop.permute.xlu0 %905
        %907 = vrot.lane.b32.xlu0 %v423, 112
        %v908 = vpop.permute.xlu0 %907
        %909 = vrot.lane.b32.xlu0 %v456, 112
        %v910 = vpop.permute.xlu0 %909
        %911 = vrot.lane.b32.xlu0 %v438, 112
        %v912 = vpop.permute.xlu0 %911
        %913 = vrot.lane.b32.xlu0 %v457, 112
        %v914 = vpop.permute.xlu0 %913
        %915 = vrot.lane.b32.xlu0 %v442, 112
        %v916 = vpop.permute.xlu0 %915
        %917 = vrot.lane.b32.xlu0 %v458, 112
        %v918 = vpop.permute.xlu0 %917
        %919 = vrot.lane.b32.xlu0 %v446, 112
        %v920 = vpop.permute.xlu0 %919
        %921 = vrot.lane.b32.xlu0 %v459, 112
        %v922 = vpop.permute.xlu0 %921
        %923 = vrot.lane.b32.xlu0 %v450, 112
        %v924 = vpop.permute.xlu0 %923
        %925 = vrot.lane.b32.xlu0 %v460, 112
        %v926 = vpop.permute.xlu0 %925
        %927 = vrot.lane.b32.xlu0 %v454, 112
        %v928 = vpop.permute.xlu0 %927
        %929 = vrot.lane.b32.xlu0 %v487, 112
        %v930 = vpop.permute.xlu0 %929
        %931 = vrot.lane.b32.xlu0 %v469, 112
        %v932 = vpop.permute.xlu0 %931
        %933 = vrot.lane.b32.xlu0 %v488, 112
        %v934 = vpop.permute.xlu0 %933
        %935 = vrot.lane.b32.xlu0 %v473, 112
        %v936 = vpop.permute.xlu0 %935
        %937 = vrot.lane.b32.xlu0 %v489, 112
        %v938 = vpop.permute.xlu0 %937
        %939 = vrot.lane.b32.xlu0 %v477, 112
        %v940 = vpop.permute.xlu0 %939
        %941 = vrot.lane.b32.xlu0 %v490, 112
        %v942 = vpop.permute.xlu0 %941
        %943 = vrot.lane.b32.xlu0 %v481, 112
        %v944 = vpop.permute.xlu0 %943
        %945 = vrot.lane.b32.xlu0 %v491, 112
        %v946 = vpop.permute.xlu0 %945
        %947 = vrot.lane.b32.xlu0 %v485, 112
        %v948 = vpop.permute.xlu0 %947
        %949 = vrot.lane.b32.xlu0 %v518, 112
        %v950 = vpop.permute.xlu0 %949
        %951 = vrot.lane.b32.xlu0 %v500, 112
        %v952 = vpop.permute.xlu0 %951
        %953 = vrot.lane.b32.xlu0 %v519, 112
        %v954 = vpop.permute.xlu0 %953
        %955 = vrot.lane.b32.xlu0 %v504, 112
        %v956 = vpop.permute.xlu0 %955
        %957 = vrot.lane.b32.xlu0 %v520, 112
        %v958 = vpop.permute.xlu0 %957
        %959 = vrot.lane.b32.xlu0 %v508, 112
        %v960 = vpop.permute.xlu0 %959
        %961 = vrot.lane.b32.xlu0 %v521, 112
        %v962 = vpop.permute.xlu0 %961
        %963 = vrot.lane.b32.xlu0 %v512, 112
        %v964 = vpop.permute.xlu0 %963
        %965 = vrot.lane.b32.xlu0 %v522, 112
        %v966 = vpop.permute.xlu0 %965
        %967 = vrot.lane.b32.xlu0 %v516, 112
        %v968 = vpop.permute.xlu0 %967
        %vm969 = vcmask 916480
        %v970 = vsel %vm969, %v870, %v872
        %v971 = vsel %vm969, %v874, %v876
        %v972 = vsel %vm969, %v878, %v880
        %v973 = vsel %vm969, %v882, %v884
        %v974 = vsel %vm969, %v886, %v888
        %v975 = vsel %vm969, %v890, %v892
        %v976 = vsel %vm969, %v894, %v896
        %v977 = vsel %vm969, %v898, %v900
        %v978 = vsel %vm969, %v902, %v904
        %v979 = vsel %vm969, %v906, %v908
        %v980 = vsel %vm969, %v910, %v912
        %v981 = vsel %vm969, %v914, %v916
        %v982 = vsel %vm969, %v918, %v920
        %v983 = vsel %vm969, %v922, %v924
        %v984 = vsel %vm969, %v926, %v928
        %v985 = vsel %vm969, %v930, %v932
        %v986 = vsel %vm969, %v934, %v936
        %v987 = vsel %vm969, %v938, %v940
        %v988 = vsel %vm969, %v942, %v944
        %v989 = vsel %vm969, %v946, %v948
        %v990 = vsel %vm969, %v950, %v952
        %v991 = vsel %vm969, %v954, %v956
        %v992 = vsel %vm969, %v958, %v960
        %v993 = vsel %vm969, %v962, %v964
        %v994 = vsel %vm969, %v966, %v968
        %v1020 = vld [vmem:[#allocation7] sm:$0xff]
        %v1021 = vld [vmem:[#allocation7 + $0x8] sm:$0xff]
        %v1022 = vld [vmem:[#allocation7 + $0x10] sm:$0xff]
        %v1023 = vld [vmem:[#allocation7 + $0x18] sm:$0xff]
        %v1024 = vld [vmem:[#allocation7 + $0x20] sm:$0xff]
        %v1025 = vld [vmem:[#allocation7 + $0x28] sm:$0xff]
        %v1026 = vld [vmem:[#allocation7 + $0x30] sm:$0xff]
        %v1027 = vld [vmem:[#allocation7 + $0x38] sm:$0xff]
        %v1028 = vld [vmem:[#allocation7 + $0x40] sm:$0xff]
        %v1029 = vld [vmem:[#allocation7 + $0x48] sm:$0xff]
        %v1030 = vld [vmem:[#allocation7 + $0x50] sm:$0xff]
        %v1031 = vld [vmem:[#allocation7 + $0x58] sm:$0xff]
        %v1032 = vld [vmem:[#allocation7 + $0x60] sm:$0xff]
        %v1033 = vld [vmem:[#allocation7 + $0x68] sm:$0xff]
        %v1034 = vld [vmem:[#allocation7 + $0x70] sm:$0xff]
        %v1035 = vld [vmem:[#allocation7 + $0x78] sm:$0xff]
        %v1036 = vld [vmem:[#allocation7 + $0x80] sm:$0xff]
        %v1037 = vld [vmem:[#allocation7 + $0x88] sm:$0xff]
        %v1038 = vld [vmem:[#allocation7 + $0x90] sm:$0xff]
        %v1039 = vld [vmem:[#allocation7 + $0x98] sm:$0xff]
        %v1040 = vld [vmem:[#allocation7 + $0xa0] sm:$0xff]
        %v1041 = vld [vmem:[#allocation7 + $0xa8] sm:$0xff]
        %v1042 = vld [vmem:[#allocation7 + $0xb0] sm:$0xff]
        %v1043 = vld [vmem:[#allocation7 + $0xb8] sm:$0xff]
        %v1044 = vld [vmem:[#allocation7 + $0xc0] sm:$0xff]
        %v1045 = vld [vmem:[#allocation7 + $0xc8] sm:$0xff]
        %v1046 = vld [vmem:[#allocation7 + $0xd0] sm:$0xff]
        %v1047 = vld [vmem:[#allocation7 + $0xd8] sm:$0xff]
        %v1048 = vld [vmem:[#allocation7 + $0xe0] sm:$0xff]
        %v1049 = vld [vmem:[#allocation7 + $0xe8] sm:$0xff]
        %v1050 = vld [vmem:[#allocation7 + $0xf0] sm:$0xff]
        %v1051 = vld [vmem:[#allocation7 + $0xf8] sm:$0xff]
        %v1052 = vld [vmem:[#allocation7 + $0x100] sm:$0xff]
        %v1053 = vld [vmem:[#allocation7 + $0x108] sm:$0xff]
        %v1054 = vld [vmem:[#allocation7 + $0x110] sm:$0xff]
        %v1055 = vld [vmem:[#allocation7 + $0x118] sm:$0xff]
        %v1056 = vld [vmem:[#allocation7 + $0x120] sm:$0xff]
        %v1057 = vld [vmem:[#allocation7 + $0x128] sm:$0xff]
        %v1058 = vld [vmem:[#allocation7 + $0x130] sm:$0xff]
        %v1059 = vld [vmem:[#allocation7 + $0x138] sm:$0xff]
        %v1060 = vld [vmem:[#allocation7 + $0x140] sm:$0xff]
        %v1061 = vld [vmem:[#allocation7 + $0x148] sm:$0xff]
        %v1062 = vld [vmem:[#allocation7 + $0x150] sm:$0xff]
        %v1063 = vld [vmem:[#allocation7 + $0x158] sm:$0xff]
        %v1064 = vld [vmem:[#allocation7 + $0x160] sm:$0xff]
        %v1065 = vld [vmem:[#allocation7 + $0x168] sm:$0xff]
        %v1066 = vld [vmem:[#allocation7 + $0x170] sm:$0xff]
        %v1067 = vld [vmem:[#allocation7 + $0x178] sm:$0xff]
        %v1068 = vld [vmem:[#allocation7 + $0x180] sm:$0xff]
        %v1069 = vld [vmem:[#allocation7 + $0x188] sm:$0xff]
        %v1070 = vld [vmem:[#allocation7 + $0x190] sm:$0xff]
        %v1071 = vld [vmem:[#allocation7 + $0x198] sm:$0xff]
        %v1072 = vld [vmem:[#allocation7 + $0x1a0] sm:$0xff]
        %v1073 = vld [vmem:[#allocation7 + $0x1a8] sm:$0xff]
        %v1074 = vld [vmem:[#allocation7 + $0x1b0] sm:$0xff]
        %v1075 = vld [vmem:[#allocation7 + $0x1b8] sm:$0xff]
        %v1076 = vld [vmem:[#allocation7 + $0x1c0] sm:$0xff]
        %v1077 = vld [vmem:[#allocation7 + $0x1c8] sm:$0xff]
        %v1078 = vld [vmem:[#allocation7 + $0x1d0] sm:$0xff]
        %v1079 = vld [vmem:[#allocation7 + $0x1d8] sm:$0xff]
        %v1080 = vld [vmem:[#allocation7 + $0x1e0] sm:$0xff]
        %v1081 = vld [vmem:[#allocation7 + $0x1e8] sm:$0xff]
        %v1082 = vld [vmem:[#allocation7 + $0x1f0] sm:$0xff]
        %v1083 = vld [vmem:[#allocation7 + $0x1f8] sm:$0xff]
        %v1084 = vld [vmem:[#allocation7 + $0x200] sm:$0xff]
        %v1085 = vld [vmem:[#allocation7 + $0x208] sm:$0xff]
        %v1086 = vld [vmem:[#allocation7 + $0x210] sm:$0xff]
        %v1087 = vld [vmem:[#allocation7 + $0x218] sm:$0xff]
        %v1088 = vld [vmem:[#allocation7 + $0x220] sm:$0xff]
        %v1089 = vld [vmem:[#allocation7 + $0x228] sm:$0xff]
        %v1090 = vld [vmem:[#allocation7 + $0x230] sm:$0xff]
        %v1091 = vld [vmem:[#allocation7 + $0x238] sm:$0xff]
        %v1092 = vld [vmem:[#allocation7 + $0x240] sm:$0xff]
        %v1093 = vld [vmem:[#allocation7 + $0x248] sm:$0xff]
        %v1094 = vld [vmem:[#allocation7 + $0x250] sm:$0xff]
        %v1095 = vld [vmem:[#allocation7 + $0x258] sm:$0xff]
        %v1096 = vld [vmem:[#allocation7 + $0x260] sm:$0xff]
        %v1097 = vld [vmem:[#allocation7 + $0x268] sm:$0xff]
        %v1098 = vld [vmem:[#allocation7 + $0x270] sm:$0xff]
        %v1099 = vld [vmem:[#allocation7 + $0x278] sm:$0xff]
        %v1100 = vld [vmem:[#allocation7 + $0x280] sm:$0xff]
        %v1101 = vld [vmem:[#allocation7 + $0x288] sm:$0xff]
        %v1102 = vld [vmem:[#allocation7 + $0x290] sm:$0xff]
        %v1103 = vld [vmem:[#allocation7 + $0x298] sm:$0xff]
        %v1104 = vld [vmem:[%s3] sm:$0xff]
        %v1105 = vld [vmem:[%s3 + $0x8] sm:$0xff]
        %v1106 = vld [vmem:[%s3 + $0x10] sm:$0xff]
        %v1107 = vld [vmem:[%s3 + $0x18] sm:$0xff]
        %v1108 = vld [vmem:[%s3 + $0x20] sm:$0xff]
        %v1109 = vld [vmem:[%s3 + $0x28] sm:$0xff]
        %v1110 = vld [vmem:[%s3 + $0x30] sm:$0xff]
        %v1111 = vld [vmem:[%s3 + $0x38] sm:$0xff]
        %v1112 = vld [vmem:[%s3 + $0x40] sm:$0xff]
        %v1113 = vld [vmem:[%s3 + $0x48] sm:$0xff]
        %v1114 = vld [vmem:[%s3 + $0x50] sm:$0xff]
        %v1115 = vld [vmem:[%s3 + $0x58] sm:$0xff]
        %1117 = vset.pattern.permute.xlu0 0
        %1118 = vperm.xlu0 %1117, %v1104
        %v1119 = vpop.permute.xlu0 %1118
        %1122 = vset.pattern.permute.xlu0 0
        %1123 = vperm.xlu0 %1122, %v1105
        %v1124 = vpop.permute.xlu0 %1123
        %1127 = vset.pattern.permute.xlu0 0
        %1128 = vperm.xlu0 %1127, %v1106
        %v1129 = vpop.permute.xlu0 %1128
        %1132 = vset.pattern.permute.xlu0 0
        %1133 = vperm.xlu0 %1132, %v1107
        %v1134 = vpop.permute.xlu0 %1133
        %1137 = vset.pattern.permute.xlu0 0
        %1138 = vperm.xlu0 %1137, %v1108
        %v1139 = vpop.permute.xlu0 %1138
        %1142 = vset.pattern.permute.xlu0 0
        %1143 = vperm.xlu0 %1142, %v1109
        %v1144 = vpop.permute.xlu0 %1143
        %1147 = vset.pattern.permute.xlu0 0
        %1148 = vperm.xlu0 %1147, %v1110
        %v1149 = vpop.permute.xlu0 %1148
        %1152 = vset.pattern.permute.xlu0 0
        %1153 = vperm.xlu0 %1152, %v1111
        %v1154 = vpop.permute.xlu0 %1153
        %1157 = vset.pattern.permute.xlu0 0
        %1158 = vperm.xlu0 %1157, %v1112
        %v1159 = vpop.permute.xlu0 %1158
        %1162 = vset.pattern.permute.xlu0 0
        %1163 = vperm.xlu0 %1162, %v1113
        %v1164 = vpop.permute.xlu0 %1163
        %1167 = vset.pattern.permute.xlu0 0
        %1168 = vperm.xlu0 %1167, %v1114
        %v1169 = vpop.permute.xlu0 %1168
        %1172 = vset.pattern.permute.xlu0 0
        %1173 = vperm.xlu0 %1172, %v1115
        %v1174 = vpop.permute.xlu0 %1173
        %v1260 = vunpack.c.l.b16 %v1020
        %v1261 = vunpack.c.h.b16 %v1020
        %v1262 = vunpack.c.l.b16 %v1021
        %v1263 = vunpack.c.h.b16 %v1021
        %v1264 = vunpack.c.l.b16 %v1022
        %v1265 = vunpack.c.h.b16 %v1022
        %v1266 = vunpack.c.l.b16 %v1023
        %v1267 = vunpack.c.h.b16 %v1023
        %v1268 = vunpack.c.l.b16 %v1024
        %v1269 = vunpack.c.h.b16 %v1024
        %v1270 = vunpack.c.l.b16 %v1025
        %v1271 = vunpack.c.h.b16 %v1025
        %v1272 = vunpack.c.l.b16 %v1026
        %v1273 = vunpack.c.h.b16 %v1026
        %v1274 = vunpack.c.l.b16 %v1027
        %v1275 = vunpack.c.h.b16 %v1027
        %v1276 = vunpack.c.l.b16 %v1028
        %v1277 = vunpack.c.h.b16 %v1028
        %v1278 = vunpack.c.l.b16 %v1029
        %v1279 = vunpack.c.h.b16 %v1029
        %v1280 = vunpack.c.l.b16 %v1030
        %v1281 = vunpack.c.h.b16 %v1030
        %v1282 = vunpack.c.l.b16 %v1031
        %v1283 = vunpack.c.h.b16 %v1031
        %v1284 = vunpack.c.l.b16 %v1032
        %v1285 = vunpack.c.h.b16 %v1032
        %v1286 = vunpack.c.l.b16 %v1033
        %v1287 = vunpack.c.h.b16 %v1033
        %v1288 = vunpack.c.l.b16 %v1034
        %v1289 = vunpack.c.h.b16 %v1034
        %v1290 = vunpack.c.l.b16 %v1035
        %v1291 = vunpack.c.h.b16 %v1035
        %v1292 = vunpack.c.l.b16 %v1036
        %v1293 = vunpack.c.h.b16 %v1036
        %v1294 = vunpack.c.l.b16 %v1037
        %v1295 = vunpack.c.h.b16 %v1037
        %v1296 = vunpack.c.l.b16 %v1038
        %v1297 = vunpack.c.h.b16 %v1038
        %v1298 = vunpack.c.l.b16 %v1039
        %v1299 = vunpack.c.h.b16 %v1039
        %v1300 = vunpack.c.l.b16 %v1040
        %v1301 = vunpack.c.h.b16 %v1040
        %v1302 = vunpack.c.l.b16 %v1041
        %v1303 = vunpack.c.h.b16 %v1041
        %v1304 = vunpack.c.l.b16 %v1042
        %v1305 = vunpack.c.h.b16 %v1042
        %v1306 = vunpack.c.l.b16 %v1043
        %v1307 = vunpack.c.h.b16 %v1043
        %v1308 = vunpack.c.l.b16 %v1044
        %v1309 = vunpack.c.h.b16 %v1044
        %v1310 = vunpack.c.l.b16 %v1045
        %v1311 = vunpack.c.h.b16 %v1045
        %v1312 = vunpack.c.l.b16 %v1046
        %v1313 = vunpack.c.h.b16 %v1046
        %v1314 = vunpack.c.l.b16 %v1047
        %v1315 = vunpack.c.h.b16 %v1047
        %v1316 = vunpack.c.l.b16 %v1048
        %v1317 = vunpack.c.h.b16 %v1048
        %v1318 = vunpack.c.l.b16 %v1049
        %v1319 = vunpack.c.h.b16 %v1049
        %v1320 = vunpack.c.l.b16 %v1050
        %v1321 = vunpack.c.h.b16 %v1050
        %v1322 = vunpack.c.l.b16 %v1051
        %v1323 = vunpack.c.h.b16 %v1051
        %v1324 = vunpack.c.l.b16 %v1052
        %v1325 = vunpack.c.h.b16 %v1052
        %v1326 = vunpack.c.l.b16 %v1053
        %v1327 = vunpack.c.h.b16 %v1053
        %v1328 = vunpack.c.l.b16 %v1054
        %v1329 = vunpack.c.h.b16 %v1054
        %v1330 = vunpack.c.l.b16 %v1055
        %v1331 = vunpack.c.h.b16 %v1055
        %v1332 = vunpack.c.l.b16 %v1056
        %v1333 = vunpack.c.h.b16 %v1056
        %v1334 = vunpack.c.l.b16 %v1057
        %v1335 = vunpack.c.h.b16 %v1057
        %v1336 = vunpack.c.l.b16 %v1058
        %v1337 = vunpack.c.h.b16 %v1058
        %v1338 = vunpack.c.l.b16 %v1059
        %v1339 = vunpack.c.h.b16 %v1059
        %v1340 = vunpack.c.l.b16 %v1060
        %v1341 = vunpack.c.h.b16 %v1060
        %v1342 = vunpack.c.l.b16 %v1061
        %v1343 = vunpack.c.h.b16 %v1061
        %v1344 = vunpack.c.l.b16 %v1062
        %v1345 = vunpack.c.h.b16 %v1062
        %v1346 = vunpack.c.l.b16 %v1063
        %v1347 = vunpack.c.h.b16 %v1063
        %v1348 = vunpack.c.l.b16 %v1064
        %v1349 = vunpack.c.h.b16 %v1064
        %v1350 = vunpack.c.l.b16 %v1065
        %v1351 = vunpack.c.h.b16 %v1065
        %v1352 = vunpack.c.l.b16 %v1066
        %v1353 = vunpack.c.h.b16 %v1066
        %v1354 = vunpack.c.l.b16 %v1067
        %v1355 = vunpack.c.h.b16 %v1067
        %v1356 = vunpack.c.l.b16 %v1068
        %v1357 = vunpack.c.h.b16 %v1068
        %v1358 = vunpack.c.l.b16 %v1069
        %v1359 = vunpack.c.h.b16 %v1069
        %v1360 = vunpack.c.l.b16 %v1070
        %v1361 = vunpack.c.h.b16 %v1070
        %v1362 = vunpack.c.l.b16 %v1071
        %v1363 = vunpack.c.h.b16 %v1071
        %v1364 = vunpack.c.l.b16 %v1072
        %v1365 = vunpack.c.h.b16 %v1072
        %v1366 = vunpack.c.l.b16 %v1073
        %v1367 = vunpack.c.h.b16 %v1073
        %v1368 = vunpack.c.l.b16 %v1074
        %v1369 = vunpack.c.h.b16 %v1074
        %v1370 = vunpack.c.l.b16 %v1075
        %v1371 = vunpack.c.h.b16 %v1075
        %v1372 = vunpack.c.l.b16 %v1076
        %v1373 = vunpack.c.h.b16 %v1076
        %v1374 = vunpack.c.l.b16 %v1077
        %v1375 = vunpack.c.h.b16 %v1077
        %v1376 = vunpack.c.l.b16 %v1078
        %v1377 = vunpack.c.h.b16 %v1078
        %v1378 = vunpack.c.l.b16 %v1079
        %v1379 = vunpack.c.h.b16 %v1079
        %v1380 = vunpack.c.l.b16 %v1080
        %v1381 = vunpack.c.h.b16 %v1080
        %v1382 = vunpack.c.l.b16 %v1081
        %v1383 = vunpack.c.h.b16 %v1081
        %v1384 = vunpack.c.l.b16 %v1082
        %v1385 = vunpack.c.h.b16 %v1082
        %v1386 = vunpack.c.l.b16 %v1083
        %v1387 = vunpack.c.h.b16 %v1083
        %v1388 = vunpack.c.l.b16 %v1084
        %v1389 = vunpack.c.h.b16 %v1084
        %v1390 = vunpack.c.l.b16 %v1085
        %v1391 = vunpack.c.h.b16 %v1085
        %v1392 = vunpack.c.l.b16 %v1086
        %v1393 = vunpack.c.h.b16 %v1086
        %v1394 = vunpack.c.l.b16 %v1087
        %v1395 = vunpack.c.h.b16 %v1087
        %v1396 = vunpack.c.l.b16 %v1088
        %v1397 = vunpack.c.h.b16 %v1088
        %v1398 = vunpack.c.l.b16 %v1089
        %v1399 = vunpack.c.h.b16 %v1089
        %v1400 = vunpack.c.l.b16 %v1090
        %v1401 = vunpack.c.h.b16 %v1090
        %v1402 = vunpack.c.l.b16 %v1091
        %v1403 = vunpack.c.h.b16 %v1091
        %v1404 = vunpack.c.l.b16 %v1092
        %v1405 = vunpack.c.h.b16 %v1092
        %v1406 = vunpack.c.l.b16 %v1093
        %v1407 = vunpack.c.h.b16 %v1093
        %v1408 = vunpack.c.l.b16 %v1094
        %v1409 = vunpack.c.h.b16 %v1094
        %v1410 = vunpack.c.l.b16 %v1095
        %v1411 = vunpack.c.h.b16 %v1095
        %v1412 = vunpack.c.l.b16 %v1096
        %v1413 = vunpack.c.h.b16 %v1096
        %v1414 = vunpack.c.l.b16 %v1097
        %v1415 = vunpack.c.h.b16 %v1097
        %v1416 = vunpack.c.l.b16 %v1098
        %v1417 = vunpack.c.h.b16 %v1098
        %v1418 = vunpack.c.l.b16 %v1099
        %v1419 = vunpack.c.h.b16 %v1099
        %v1420 = vunpack.c.l.b16 %v1100
        %v1421 = vunpack.c.h.b16 %v1100
        %v1422 = vunpack.c.l.b16 %v1101
        %v1423 = vunpack.c.h.b16 %v1101
        %v1424 = vunpack.c.l.b16 %v1102
        %v1425 = vunpack.c.h.b16 %v1102
        %v1426 = vunpack.c.l.b16 %v1103
        %v1427 = vunpack.c.h.b16 %v1103
        %v1428 = vpack.c.b16 %v1274, %v1260
        %v1429 = vpack.c.b16 %v1275, %v1261
        %v1430 = vpack.c.b16 %v1276, %v1262
        %v1431 = vpack.c.b16 %v1277, %v1263
        %v1432 = vpack.c.b16 %v1278, %v1264
        %v1433 = vpack.c.b16 %v1279, %v1265
        %v1434 = vpack.c.b16 %v1280, %v1266
        %v1435 = vpack.c.b16 %v1281, %v1267
        %v1436 = vpack.c.b16 %v1282, %v1268
        %v1437 = vpack.c.b16 %v1283, %v1269
        %v1438 = vpack.c.b16 %v1284, %v1270
        %v1439 = vpack.c.b16 %v1285, %v1271
        %v1440 = vpack.c.b16 %v1286, %v1272
        %v1441 = vpack.c.b16 %v1287, %v1273
        %v1442 = vpack.c.b16 %v1302, %v1288
        %v1443 = vpack.c.b16 %v1303, %v1289
        %v1444 = vpack.c.b16 %v1304, %v1290
        %v1445 = vpack.c.b16 %v1305, %v1291
        %v1446 = vpack.c.b16 %v1306, %v1292
        %v1447 = vpack.c.b16 %v1307, %v1293
        %v1448 = vpack.c.b16 %v1308, %v1294
        %v1449 = vpack.c.b16 %v1309, %v1295
        %v1450 = vpack.c.b16 %v1310, %v1296
        %v1451 = vpack.c.b16 %v1311, %v1297
        %v1452 = vpack.c.b16 %v1312, %v1298
        %v1453 = vpack.c.b16 %v1313, %v1299
        %v1454 = vpack.c.b16 %v1314, %v1300
        %v1455 = vpack.c.b16 %v1315, %v1301
        %v1456 = vpack.c.b16 %v1330, %v1316
        %v1457 = vpack.c.b16 %v1331, %v1317
        %v1458 = vpack.c.b16 %v1332, %v1318
        %v1459 = vpack.c.b16 %v1333, %v1319
        %v1460 = vpack.c.b16 %v1334, %v1320
        %v1461 = vpack.c.b16 %v1335, %v1321
        %v1462 = vpack.c.b16 %v1336, %v1322
        %v1463 = vpack.c.b16 %v1337, %v1323
        %v1464 = vpack.c.b16 %v1338, %v1324
        %v1465 = vpack.c.b16 %v1339, %v1325
        %v1466 = vpack.c.b16 %v1340, %v1326
        %v1467 = vpack.c.b16 %v1341, %v1327
        %v1468 = vpack.c.b16 %v1342, %v1328
        %v1469 = vpack.c.b16 %v1343, %v1329
        %v1470 = vpack.c.b16 %v1358, %v1344
        %v1471 = vpack.c.b16 %v1359, %v1345
        %v1472 = vpack.c.b16 %v1360, %v1346
        %v1473 = vpack.c.b16 %v1361, %v1347
        %v1474 = vpack.c.b16 %v1362, %v1348
        %v1475 = vpack.c.b16 %v1363, %v1349
        %v1476 = vpack.c.b16 %v1364, %v1350
        %v1477 = vpack.c.b16 %v1365, %v1351
        %v1478 = vpack.c.b16 %v1366, %v1352
        %v1479 = vpack.c.b16 %v1367, %v1353
        %v1480 = vpack.c.b16 %v1368, %v1354
        %v1481 = vpack.c.b16 %v1369, %v1355
        %v1482 = vpack.c.b16 %v1370, %v1356
        %v1483 = vpack.c.b16 %v1371, %v1357
        %v1484 = vpack.c.b16 %v1386, %v1372
        %v1485 = vpack.c.b16 %v1387, %v1373
        %v1486 = vpack.c.b16 %v1388, %v1374
        %v1487 = vpack.c.b16 %v1389, %v1375
        %v1488 = vpack.c.b16 %v1390, %v1376
        %v1489 = vpack.c.b16 %v1391, %v1377
        %v1490 = vpack.c.b16 %v1392, %v1378
        %v1491 = vpack.c.b16 %v1393, %v1379
        %v1492 = vpack.c.b16 %v1394, %v1380
        %v1493 = vpack.c.b16 %v1395, %v1381
        %v1494 = vpack.c.b16 %v1396, %v1382
        %v1495 = vpack.c.b16 %v1397, %v1383
        %v1496 = vpack.c.b16 %v1398, %v1384
        %v1497 = vpack.c.b16 %v1399, %v1385
        %v1498 = vpack.c.b16 %v1414, %v1400
        %v1499 = vpack.c.b16 %v1415, %v1401
        %v1500 = vpack.c.b16 %v1416, %v1402
        %v1501 = vpack.c.b16 %v1417, %v1403
        %v1502 = vpack.c.b16 %v1418, %v1404
        %v1503 = vpack.c.b16 %v1419, %v1405
        %v1504 = vpack.c.b16 %v1420, %v1406
        %v1505 = vpack.c.b16 %v1421, %v1407
        %v1506 = vpack.c.b16 %v1422, %v1408
        %v1507 = vpack.c.b16 %v1423, %v1409
        %v1508 = vpack.c.b16 %v1424, %v1410
        %v1509 = vpack.c.b16 %v1425, %v1411
        %v1510 = vpack.c.b16 %v1426, %v1412
        %v1511 = vpack.c.b16 %v1427, %v1413
        %vm1590 = vcmask 130048
        %v1592 = vsel %vm1590, %v1441, 0
        %v1595 = vsel %vm1590, %v1455, 0
        %v1598 = vsel %vm1590, %v1469, 0
        %v1601 = vsel %vm1590, %v1483, 0
        %v1604 = vsel %vm1590, %v1497, 0
        %v1607 = vsel %vm1590, %v1511, 0
        %1609 = vmatpush.bf16.msra.mxu0 %v427
        %1610 = vmatpush.bf16.msra.mxu0 %v426
        %1611 = vmatpush.bf16.msra.mxu0 %v425
        %1612 = vmatpush.bf16.msra.mxu0 %v373
        %1613 = vmatpush.bf16.msra.mxu0 %v372
        %1614 = vmatpush.bf16.msra.mxu0 %v371
        %1615 = vmatpush.bf16.msra.mxu0 %v370
        %1616 = vmatpush.bf16.msra.mxu0 %v369
        %1617 = vmatmul.bf16.gmra.mxu0 %v1428
        %v1618 = vpop.f32.mrf.mxu0
        %v1619 = vadd.f32 %v1119, %v1618
        %v1620 = vpop.f32.mrf.mxu0
        %v1621 = vadd.f32 %v1124, %v1620
        %1622 = vmatmul.bf16.gmra.mxu0 %v1442
        %v1623 = vpop.f32.mrf.mxu0
        %v1624 = vadd.f32 %v1129, %v1623
        %v1625 = vpop.f32.mrf.mxu0
        %v1626 = vadd.f32 %v1134, %v1625
        %1627 = vmatmul.bf16.gmra.mxu0 %v1456
        %v1628 = vpop.f32.mrf.mxu0
        %v1629 = vadd.f32 %v1139, %v1628
        %v1630 = vpop.f32.mrf.mxu0
        %v1631 = vadd.f32 %v1144, %v1630
        %1632 = vmatmul.bf16.gmra.mxu0 %v1470
        %v1633 = vpop.f32.mrf.mxu0
        %v1634 = vadd.f32 %v1149, %v1633
        %v1635 = vpop.f32.mrf.mxu0
        %v1636 = vadd.f32 %v1154, %v1635
        %1637 = vmatmul.bf16.gmra.mxu0 %v1484
        %v1638 = vpop.f32.mrf.mxu0
        %v1639 = vadd.f32 %v1159, %v1638
        %v1640 = vpop.f32.mrf.mxu0
        %v1641 = vadd.f32 %v1164, %v1640
        %1642 = vmatmul.bf16.gmra.mxu0 %v1498
        %v1643 = vpop.f32.mrf.mxu0
        %v1644 = vadd.f32 %v1169, %v1643
        %v1645 = vpop.f32.mrf.mxu0
        %v1646 = vadd.f32 %v1174, %v1645
        %1647 = vdwg.mxu0
        %1648 = vmatpush.bf16.msra.mxu0 %v487
        %1649 = vmatpush.bf16.msra.mxu0 %v460
        %1650 = vmatpush.bf16.msra.mxu0 %v459
        %1651 = vmatpush.bf16.msra.mxu0 %v458
        %1652 = vmatpush.bf16.msra.mxu0 %v457
        %1653 = vmatpush.bf16.msra.mxu0 %v456
        %1654 = vmatpush.bf16.msra.mxu0 %v429
        %1655 = vmatpush.bf16.msra.mxu0 %v428
        %1656 = vmatmul.bf16.gmra.mxu0 %v1429
        %v1657 = vpop.f32.mrf.mxu0
        %v1658 = vadd.f32 %v1619, %v1657
        %v1659 = vpop.f32.mrf.mxu0
        %v1660 = vadd.f32 %v1621, %v1659
        %1661 = vmatmul.bf16.gmra.mxu0 %v1443
        %v1662 = vpop.f32.mrf.mxu0
        %v1663 = vadd.f32 %v1624, %v1662
        %v1664 = vpop.f32.mrf.mxu0
        %v1665 = vadd.f32 %v1626, %v1664
        %1666 = vmatmul.bf16.gmra.mxu0 %v1457
        %v1667 = vpop.f32.mrf.mxu0
        %v1668 = vadd.f32 %v1629, %v1667
        %v1669 = vpop.f32.mrf.mxu0
        %v1670 = vadd.f32 %v1631, %v1669
        %1671 = vmatmul.bf16.gmra.mxu0 %v1471
        %v1672 = vpop.f32.mrf.mxu0
        %v1673 = vadd.f32 %v1634, %v1672
        %v1674 = vpop.f32.mrf.mxu0
        %v1675 = vadd.f32 %v1636, %v1674
        %1676 = vmatmul.bf16.gmra.mxu0 %v1485
        %v1677 = vpop.f32.mrf.mxu0
        %v1678 = vadd.f32 %v1639, %v1677
        %v1679 = vpop.f32.mrf.mxu0
        %v1680 = vadd.f32 %v1641, %v1679
        %1681 = vmatmul.bf16.gmra.mxu0 %v1499
        %v1682 = vpop.f32.mrf.mxu0
        %v1683 = vadd.f32 %v1644, %v1682
        %v1684 = vpop.f32.mrf.mxu0
        %v1685 = vadd.f32 %v1646, %v1684
        %1686 = vdwg.mxu0
        %1687 = vmatpush.bf16.msra.mxu0 %v521
        %1688 = vmatpush.bf16.msra.mxu0 %v520
        %1689 = vmatpush.bf16.msra.mxu0 %v519
        %1690 = vmatpush.bf16.msra.mxu0 %v518
        %1691 = vmatpush.bf16.msra.mxu0 %v491
        %1692 = vmatpush.bf16.msra.mxu0 %v490
        %1693 = vmatpush.bf16.msra.mxu0 %v489
        %1694 = vmatpush.bf16.msra.mxu0 %v488
        %1695 = vmatmul.bf16.gmra.mxu0 %v1430
        %v1696 = vpop.f32.mrf.mxu0
        %v1697 = vadd.f32 %v1658, %v1696
        %v1698 = vpop.f32.mrf.mxu0
        %v1699 = vadd.f32 %v1660, %v1698
        %1700 = vmatmul.bf16.gmra.mxu0 %v1444
        %v1701 = vpop.f32.mrf.mxu0
        %v1702 = vadd.f32 %v1663, %v1701
        %v1703 = vpop.f32.mrf.mxu0
        %v1704 = vadd.f32 %v1665, %v1703
        %1705 = vmatmul.bf16.gmra.mxu0 %v1458
        %v1706 = vpop.f32.mrf.mxu0
        %v1707 = vadd.f32 %v1668, %v1706
        %v1708 = vpop.f32.mrf.mxu0
        %v1709 = vadd.f32 %v1670, %v1708
        %1710 = vmatmul.bf16.gmra.mxu0 %v1472
        %v1711 = vpop.f32.mrf.mxu0
        %v1712 = vadd.f32 %v1673, %v1711
        %v1713 = vpop.f32.mrf.mxu0
        %v1714 = vadd.f32 %v1675, %v1713
        %1715 = vmatmul.bf16.gmra.mxu0 %v1486
        %v1716 = vpop.f32.mrf.mxu0
        %v1717 = vadd.f32 %v1678, %v1716
        %v1718 = vpop.f32.mrf.mxu0
        %v1719 = vadd.f32 %v1680, %v1718
        %1720 = vmatmul.bf16.gmra.mxu0 %v1500
        %v1721 = vpop.f32.mrf.mxu0
        %v1722 = vadd.f32 %v1683, %v1721
        %v1723 = vpop.f32.mrf.mxu0
        %v1724 = vadd.f32 %v1685, %v1723
        %1725 = vdwg.mxu0
        %1726 = vmatpush.bf16.msra.mxu0 %v581
        %1727 = vmatpush.bf16.msra.mxu0 %v580
        %1728 = vmatpush.bf16.msra.mxu0 %v553
        %1729 = vmatpush.bf16.msra.mxu0 %v552
        %1730 = vmatpush.bf16.msra.mxu0 %v551
        %1731 = vmatpush.bf16.msra.mxu0 %v550
        %1732 = vmatpush.bf16.msra.mxu0 %v549
        %1733 = vmatpush.bf16.msra.mxu0 %v522
        %1734 = vmatmul.bf16.gmra.mxu0 %v1431
        %v1735 = vpop.f32.mrf.mxu0
        %v1736 = vadd.f32 %v1697, %v1735
        %v1737 = vpop.f32.mrf.mxu0
        %v1738 = vadd.f32 %v1699, %v1737
        %1739 = vmatmul.bf16.gmra.mxu0 %v1445
        %v1740 = vpop.f32.mrf.mxu0
        %v1741 = vadd.f32 %v1702, %v1740
        %v1742 = vpop.f32.mrf.mxu0
        %v1743 = vadd.f32 %v1704, %v1742
        %1744 = vmatmul.bf16.gmra.mxu0 %v1459
        %v1745 = vpop.f32.mrf.mxu0
        %v1746 = vadd.f32 %v1707, %v1745
        %v1747 = vpop.f32.mrf.mxu0
        %v1748 = vadd.f32 %v1709, %v1747
        %1749 = vmatmul.bf16.gmra.mxu0 %v1473
        %v1750 = vpop.f32.mrf.mxu0
        %v1751 = vadd.f32 %v1712, %v1750
        %v1752 = vpop.f32.mrf.mxu0
        %v1753 = vadd.f32 %v1714, %v1752
        %1754 = vmatmul.bf16.gmra.mxu0 %v1487
        %v1755 = vpop.f32.mrf.mxu0
        %v1756 = vadd.f32 %v1717, %v1755
        %v1757 = vpop.f32.mrf.mxu0
        %v1758 = vadd.f32 %v1719, %v1757
        %1759 = vmatmul.bf16.gmra.mxu0 %v1501
        %v1760 = vpop.f32.mrf.mxu0
        %v1761 = vadd.f32 %v1722, %v1760
        %v1762 = vpop.f32.mrf.mxu0
        %v1763 = vadd.f32 %v1724, %v1762
        %1764 = vdwg.mxu0
        %1765 = vmatpush.bf16.msra.mxu0 %v615
        %1766 = vmatpush.bf16.msra.mxu0 %v614
        %1767 = vmatpush.bf16.msra.mxu0 %v613
        %1768 = vmatpush.bf16.msra.mxu0 %v612
        %1769 = vmatpush.bf16.msra.mxu0 %v611
        %1770 = vmatpush.bf16.msra.mxu0 %v584
        %1771 = vmatpush.bf16.msra.mxu0 %v583
        %1772 = vmatpush.bf16.msra.mxu0 %v582
        %1773 = vmatmul.bf16.gmra.mxu0 %v1432
        %v1774 = vpop.f32.mrf.mxu0
        %v1775 = vadd.f32 %v1736, %v1774
        %v1776 = vpop.f32.mrf.mxu0
        %v1777 = vadd.f32 %v1738, %v1776
        %1778 = vmatmul.bf16.gmra.mxu0 %v1446
        %v1779 = vpop.f32.mrf.mxu0
        %v1780 = vadd.f32 %v1741, %v1779
        %v1781 = vpop.f32.mrf.mxu0
        %v1782 = vadd.f32 %v1743, %v1781
        %1783 = vmatmul.bf16.gmra.mxu0 %v1460
        %v1784 = vpop.f32.mrf.mxu0
        %v1785 = vadd.f32 %v1746, %v1784
        %v1786 = vpop.f32.mrf.mxu0
        %v1787 = vadd.f32 %v1748, %v1786
        %1788 = vmatmul.bf16.gmra.mxu0 %v1474
        %v1789 = vpop.f32.mrf.mxu0
        %v1790 = vadd.f32 %v1751, %v1789
        %v1791 = vpop.f32.mrf.mxu0
        %v1792 = vadd.f32 %v1753, %v1791
        %1793 = vmatmul.bf16.gmra.mxu0 %v1488
        %v1794 = vpop.f32.mrf.mxu0
        %v1795 = vadd.f32 %v1756, %v1794
        %v1796 = vpop.f32.mrf.mxu0
        %v1797 = vadd.f32 %v1758, %v1796
        %1798 = vmatmul.bf16.gmra.mxu0 %v1502
        %v1799 = vpop.f32.mrf.mxu0
        %v1800 = vadd.f32 %v1761, %v1799
        %v1801 = vpop.f32.mrf.mxu0
        %v1802 = vadd.f32 %v1763, %v1801
        %1803 = vdwg.mxu0
        %1804 = vmatpush.bf16.msra.mxu0 %v675
        %1805 = vmatpush.bf16.msra.mxu0 %v674
        %1806 = vmatpush.bf16.msra.mxu0 %v673
        %1807 = vmatpush.bf16.msra.mxu0 %v646
        %1808 = vmatpush.bf16.msra.mxu0 %v645
        %1809 = vmatpush.bf16.msra.mxu0 %v644
        %1810 = vmatpush.bf16.msra.mxu0 %v643
        %1811 = vmatpush.bf16.msra.mxu0 %v642
        %1812 = vmatmul.bf16.gmra.mxu0 %v1433
        %v1813 = vpop.f32.mrf.mxu0
        %v1814 = vadd.f32 %v1775, %v1813
        %v1815 = vpop.f32.mrf.mxu0
        %v1816 = vadd.f32 %v1777, %v1815
        %1817 = vmatmul.bf16.gmra.mxu0 %v1447
        %v1818 = vpop.f32.mrf.mxu0
        %v1819 = vadd.f32 %v1780, %v1818
        %v1820 = vpop.f32.mrf.mxu0
        %v1821 = vadd.f32 %v1782, %v1820
        %1822 = vmatmul.bf16.gmra.mxu0 %v1461
        %v1823 = vpop.f32.mrf.mxu0
        %v1824 = vadd.f32 %v1785, %v1823
        %v1825 = vpop.f32.mrf.mxu0
        %v1826 = vadd.f32 %v1787, %v1825
        %1827 = vmatmul.bf16.gmra.mxu0 %v1475
        %v1828 = vpop.f32.mrf.mxu0
        %v1829 = vadd.f32 %v1790, %v1828
        %v1830 = vpop.f32.mrf.mxu0
        %v1831 = vadd.f32 %v1792, %v1830
        %1832 = vmatmul.bf16.gmra.mxu0 %v1489
        %v1833 = vpop.f32.mrf.mxu0
        %v1834 = vadd.f32 %v1795, %v1833
        %v1835 = vpop.f32.mrf.mxu0
        %v1836 = vadd.f32 %v1797, %v1835
        %1837 = vmatmul.bf16.gmra.mxu0 %v1503
        %v1838 = vpop.f32.mrf.mxu0
        %v1839 = vadd.f32 %v1800, %v1838
        %v1840 = vpop.f32.mrf.mxu0
        %v1841 = vadd.f32 %v1802, %v1840
        %1842 = vdwg.mxu0
        %1843 = vmatpush.bf16.msra.mxu0 %v735
        %1844 = vmatpush.bf16.msra.mxu0 %v708
        %1845 = vmatpush.bf16.msra.mxu0 %v707
        %1846 = vmatpush.bf16.msra.mxu0 %v706
        %1847 = vmatpush.bf16.msra.mxu0 %v705
        %1848 = vmatpush.bf16.msra.mxu0 %v704
        %1849 = vmatpush.bf16.msra.mxu0 %v677
        %1850 = vmatpush.bf16.msra.mxu0 %v676
        %1851 = vmatmul.bf16.gmra.mxu0 %v1434
        %v1852 = vpop.f32.mrf.mxu0
        %v1853 = vadd.f32 %v1814, %v1852
        %v1854 = vpop.f32.mrf.mxu0
        %v1855 = vadd.f32 %v1816, %v1854
        %1856 = vmatmul.bf16.gmra.mxu0 %v1448
        %v1857 = vpop.f32.mrf.mxu0
        %v1858 = vadd.f32 %v1819, %v1857
        %v1859 = vpop.f32.mrf.mxu0
        %v1860 = vadd.f32 %v1821, %v1859
        %1861 = vmatmul.bf16.gmra.mxu0 %v1462
        %v1862 = vpop.f32.mrf.mxu0
        %v1863 = vadd.f32 %v1824, %v1862
        %v1864 = vpop.f32.mrf.mxu0
        %v1865 = vadd.f32 %v1826, %v1864
        %1866 = vmatmul.bf16.gmra.mxu0 %v1476
        %v1867 = vpop.f32.mrf.mxu0
        %v1868 = vadd.f32 %v1829, %v1867
        %v1869 = vpop.f32.mrf.mxu0
        %v1870 = vadd.f32 %v1831, %v1869
        %1871 = vmatmul.bf16.gmra.mxu0 %v1490
        %v1872 = vpop.f32.mrf.mxu0
        %v1873 = vadd.f32 %v1834, %v1872
        %v1874 = vpop.f32.mrf.mxu0
        %v1875 = vadd.f32 %v1836, %v1874
        %1876 = vmatmul.bf16.gmra.mxu0 %v1504
        %v1877 = vpop.f32.mrf.mxu0
        %v1878 = vadd.f32 %v1839, %v1877
        %v1879 = vpop.f32.mrf.mxu0
        %v1880 = vadd.f32 %v1841, %v1879
        %1881 = vdwg.mxu0
        %1882 = vmatpush.bf16.msra.mxu0 %v769
        %1883 = vmatpush.bf16.msra.mxu0 %v768
        %1884 = vmatpush.bf16.msra.mxu0 %v767
        %1885 = vmatpush.bf16.msra.mxu0 %v766
        %1886 = vmatpush.bf16.msra.mxu0 %v739
        %1887 = vmatpush.bf16.msra.mxu0 %v738
        %1888 = vmatpush.bf16.msra.mxu0 %v737
        %1889 = vmatpush.bf16.msra.mxu0 %v736
        %1890 = vmatmul.bf16.gmra.mxu0 %v1435
        %v1891 = vpop.f32.mrf.mxu0
        %v1892 = vadd.f32 %v1853, %v1891
        %v1893 = vpop.f32.mrf.mxu0
        %v1894 = vadd.f32 %v1855, %v1893
        %1895 = vmatmul.bf16.gmra.mxu0 %v1449
        %v1896 = vpop.f32.mrf.mxu0
        %v1897 = vadd.f32 %v1858, %v1896
        %v1898 = vpop.f32.mrf.mxu0
        %v1899 = vadd.f32 %v1860, %v1898
        %1900 = vmatmul.bf16.gmra.mxu0 %v1463
        %v1901 = vpop.f32.mrf.mxu0
        %v1902 = vadd.f32 %v1863, %v1901
        %v1903 = vpop.f32.mrf.mxu0
        %v1904 = vadd.f32 %v1865, %v1903
        %1905 = vmatmul.bf16.gmra.mxu0 %v1477
        %v1906 = vpop.f32.mrf.mxu0
        %v1907 = vadd.f32 %v1868, %v1906
        %v1908 = vpop.f32.mrf.mxu0
        %v1909 = vadd.f32 %v1870, %v1908
        %1910 = vmatmul.bf16.gmra.mxu0 %v1491
        %v1911 = vpop.f32.mrf.mxu0
        %v1912 = vadd.f32 %v1873, %v1911
        %v1913 = vpop.f32.mrf.mxu0
        %v1914 = vadd.f32 %v1875, %v1913
        %1915 = vmatmul.bf16.gmra.mxu0 %v1505
        %v1916 = vpop.f32.mrf.mxu0
        %v1917 = vadd.f32 %v1878, %v1916
        %v1918 = vpop.f32.mrf.mxu0
        %v1919 = vadd.f32 %v1880, %v1918
        %1920 = vdwg.mxu0
        %1921 = vmatpush.bf16.msra.mxu0 %v829
        %1922 = vmatpush.bf16.msra.mxu0 %v828
        %1923 = vmatpush.bf16.msra.mxu0 %v801
        %1924 = vmatpush.bf16.msra.mxu0 %v800
        %1925 = vmatpush.bf16.msra.mxu0 %v799
        %1926 = vmatpush.bf16.msra.mxu0 %v798
        %1927 = vmatpush.bf16.msra.mxu0 %v797
        %1928 = vmatpush.bf16.msra.mxu0 %v770
        %1929 = vmatmul.bf16.gmra.mxu0 %v1436
        %v1930 = vpop.f32.mrf.mxu0
        %v1931 = vadd.f32 %v1892, %v1930
        %v1932 = vpop.f32.mrf.mxu0
        %v1933 = vadd.f32 %v1894, %v1932
        %1934 = vmatmul.bf16.gmra.mxu0 %v1450
        %v1935 = vpop.f32.mrf.mxu0
        %v1936 = vadd.f32 %v1897, %v1935
        %v1937 = vpop.f32.mrf.mxu0
        %v1938 = vadd.f32 %v1899, %v1937
        %1939 = vmatmul.bf16.gmra.mxu0 %v1464
        %v1940 = vpop.f32.mrf.mxu0
        %v1941 = vadd.f32 %v1902, %v1940
        %v1942 = vpop.f32.mrf.mxu0
        %v1943 = vadd.f32 %v1904, %v1942
        %1944 = vmatmul.bf16.gmra.mxu0 %v1478
        %v1945 = vpop.f32.mrf.mxu0
        %v1946 = vadd.f32 %v1907, %v1945
        %v1947 = vpop.f32.mrf.mxu0
        %v1948 = vadd.f32 %v1909, %v1947
        %1949 = vmatmul.bf16.gmra.mxu0 %v1492
        %v1950 = vpop.f32.mrf.mxu0
        %v1951 = vadd.f32 %v1912, %v1950
        %v1952 = vpop.f32.mrf.mxu0
        %v1953 = vadd.f32 %v1914, %v1952
        %1954 = vmatmul.bf16.gmra.mxu0 %v1506
        %v1955 = vpop.f32.mrf.mxu0
        %v1956 = vadd.f32 %v1917, %v1955
        %v1957 = vpop.f32.mrf.mxu0
        %v1958 = vadd.f32 %v1919, %v1957
        %1959 = vdwg.mxu0
        %1960 = vmatpush.bf16.msra.mxu0 %v863
        %1961 = vmatpush.bf16.msra.mxu0 %v862
        %1962 = vmatpush.bf16.msra.mxu0 %v861
        %1963 = vmatpush.bf16.msra.mxu0 %v860
        %1964 = vmatpush.bf16.msra.mxu0 %v859
        %1965 = vmatpush.bf16.msra.mxu0 %v832
        %1966 = vmatpush.bf16.msra.mxu0 %v831
        %1967 = vmatpush.bf16.msra.mxu0 %v830
        %1968 = vmatmul.bf16.gmra.mxu0 %v1437
        %v1969 = vpop.f32.mrf.mxu0
        %v1970 = vadd.f32 %v1931, %v1969
        %v1971 = vpop.f32.mrf.mxu0
        %v1972 = vadd.f32 %v1933, %v1971
        %1973 = vmatmul.bf16.gmra.mxu0 %v1451
        %v1974 = vpop.f32.mrf.mxu0
        %v1975 = vadd.f32 %v1936, %v1974
        %v1976 = vpop.f32.mrf.mxu0
        %v1977 = vadd.f32 %v1938, %v1976
        %1978 = vmatmul.bf16.gmra.mxu0 %v1465
        %v1979 = vpop.f32.mrf.mxu0
        %v1980 = vadd.f32 %v1941, %v1979
        %v1981 = vpop.f32.mrf.mxu0
        %v1982 = vadd.f32 %v1943, %v1981
        %1983 = vmatmul.bf16.gmra.mxu0 %v1479
        %v1984 = vpop.f32.mrf.mxu0
        %v1985 = vadd.f32 %v1946, %v1984
        %v1986 = vpop.f32.mrf.mxu0
        %v1987 = vadd.f32 %v1948, %v1986
        %1988 = vmatmul.bf16.gmra.mxu0 %v1493
        %v1989 = vpop.f32.mrf.mxu0
        %v1990 = vadd.f32 %v1951, %v1989
        %v1991 = vpop.f32.mrf.mxu0
        %v1992 = vadd.f32 %v1953, %v1991
        %1993 = vmatmul.bf16.gmra.mxu0 %v1507
        %v1994 = vpop.f32.mrf.mxu0
        %v1995 = vadd.f32 %v1956, %v1994
        %v1996 = vpop.f32.mrf.mxu0
        %v1997 = vadd.f32 %v1958, %v1996
        %1998 = vdwg.mxu0
        %1999 = vmatpush.bf16.msra.mxu0 %v977
        %2000 = vmatpush.bf16.msra.mxu0 %v976
        %2001 = vmatpush.bf16.msra.mxu0 %v975
        %2002 = vmatpush.bf16.msra.mxu0 %v974
        %2003 = vmatpush.bf16.msra.mxu0 %v973
        %2004 = vmatpush.bf16.msra.mxu0 %v972
        %2005 = vmatpush.bf16.msra.mxu0 %v971
        %2006 = vmatpush.bf16.msra.mxu0 %v970
        %2007 = vmatmul.bf16.gmra.mxu0 %v1438
        %v2008 = vpop.f32.mrf.mxu0
        %v2009 = vadd.f32 %v1970, %v2008
        %v2010 = vpop.f32.mrf.mxu0
        %v2011 = vadd.f32 %v1972, %v2010
        %2012 = vmatmul.bf16.gmra.mxu0 %v1452
        %v2013 = vpop.f32.mrf.mxu0
        %v2014 = vadd.f32 %v1975, %v2013
        %v2015 = vpop.f32.mrf.mxu0
        %v2016 = vadd.f32 %v1977, %v2015
        %2017 = vmatmul.bf16.gmra.mxu0 %v1466
        %v2018 = vpop.f32.mrf.mxu0
        %v2019 = vadd.f32 %v1980, %v2018
        %v2020 = vpop.f32.mrf.mxu0
        %v2021 = vadd.f32 %v1982, %v2020
        %2022 = vmatmul.bf16.gmra.mxu0 %v1480
        %v2023 = vpop.f32.mrf.mxu0
        %v2024 = vadd.f32 %v1985, %v2023
        %v2025 = vpop.f32.mrf.mxu0
        %v2026 = vadd.f32 %v1987, %v2025
        %2027 = vmatmul.bf16.gmra.mxu0 %v1494
        %v2028 = vpop.f32.mrf.mxu0
        %v2029 = vadd.f32 %v1990, %v2028
        %v2030 = vpop.f32.mrf.mxu0
        %v2031 = vadd.f32 %v1992, %v2030
        %2032 = vmatmul.bf16.gmra.mxu0 %v1508
        %v2033 = vpop.f32.mrf.mxu0
        %v2034 = vadd.f32 %v1995, %v2033
        %v2035 = vpop.f32.mrf.mxu0
        %v2036 = vadd.f32 %v1997, %v2035
        %2037 = vdwg.mxu0
        %2038 = vmatpush.bf16.msra.mxu0 %v985
        %2039 = vmatpush.bf16.msra.mxu0 %v984
        %2040 = vmatpush.bf16.msra.mxu0 %v983
        %2041 = vmatpush.bf16.msra.mxu0 %v982
        %2042 = vmatpush.bf16.msra.mxu0 %v981
        %2043 = vmatpush.bf16.msra.mxu0 %v980
        %2044 = vmatpush.bf16.msra.mxu0 %v979
        %2045 = vmatpush.bf16.msra.mxu0 %v978
        %2046 = vmatmul.bf16.gmra.mxu0 %v1439
        %v2047 = vpop.f32.mrf.mxu0
        %v2048 = vadd.f32 %v2009, %v2047
        %v2049 = vpop.f32.mrf.mxu0
        %v2050 = vadd.f32 %v2011, %v2049
        %2051 = vmatmul.bf16.gmra.mxu0 %v1453
        %v2052 = vpop.f32.mrf.mxu0
        %v2053 = vadd.f32 %v2014, %v2052
        %v2054 = vpop.f32.mrf.mxu0
        %v2055 = vadd.f32 %v2016, %v2054
        %2056 = vmatmul.bf16.gmra.mxu0 %v1467
        %v2057 = vpop.f32.mrf.mxu0
        %v2058 = vadd.f32 %v2019, %v2057
        %v2059 = vpop.f32.mrf.mxu0
        %v2060 = vadd.f32 %v2021, %v2059
        %2061 = vmatmul.bf16.gmra.mxu0 %v1481
        %v2062 = vpop.f32.mrf.mxu0
        %v2063 = vadd.f32 %v2024, %v2062
        %v2064 = vpop.f32.mrf.mxu0
        %v2065 = vadd.f32 %v2026, %v2064
        %2066 = vmatmul.bf16.gmra.mxu0 %v1495
        %v2067 = vpop.f32.mrf.mxu0
        %v2068 = vadd.f32 %v2029, %v2067
        %v2069 = vpop.f32.mrf.mxu0
        %v2070 = vadd.f32 %v2031, %v2069
        %2071 = vmatmul.bf16.gmra.mxu0 %v1509
        %v2072 = vpop.f32.mrf.mxu0
        %v2073 = vadd.f32 %v2034, %v2072
        %v2074 = vpop.f32.mrf.mxu0
        %v2075 = vadd.f32 %v2036, %v2074
        %2076 = vdwg.mxu0
        %2077 = vmatpush.bf16.msra.mxu0 %v993
        %2078 = vmatpush.bf16.msra.mxu0 %v992
        %2079 = vmatpush.bf16.msra.mxu0 %v991
        %2080 = vmatpush.bf16.msra.mxu0 %v990
        %2081 = vmatpush.bf16.msra.mxu0 %v989
        %2082 = vmatpush.bf16.msra.mxu0 %v988
        %2083 = vmatpush.bf16.msra.mxu0 %v987
        %2084 = vmatpush.bf16.msra.mxu0 %v986
        %2085 = vmatmul.bf16.gmra.mxu0 %v1440
        %v2086 = vpop.f32.mrf.mxu0
        %v2087 = vadd.f32 %v2048, %v2086
        %v2088 = vpop.f32.mrf.mxu0
        %v2089 = vadd.f32 %v2050, %v2088
        %2090 = vmatmul.bf16.gmra.mxu0 %v1454
        %v2091 = vpop.f32.mrf.mxu0
        %v2092 = vadd.f32 %v2053, %v2091
        %v2093 = vpop.f32.mrf.mxu0
        %v2094 = vadd.f32 %v2055, %v2093
        %2095 = vmatmul.bf16.gmra.mxu0 %v1468
        %v2096 = vpop.f32.mrf.mxu0
        %v2097 = vadd.f32 %v2058, %v2096
        %v2098 = vpop.f32.mrf.mxu0
        %v2099 = vadd.f32 %v2060, %v2098
        %2100 = vmatmul.bf16.gmra.mxu0 %v1482
        %v2101 = vpop.f32.mrf.mxu0
        %v2102 = vadd.f32 %v2063, %v2101
        %v2103 = vpop.f32.mrf.mxu0
        %v2104 = vadd.f32 %v2065, %v2103
        %2105 = vmatmul.bf16.gmra.mxu0 %v1496
        %v2106 = vpop.f32.mrf.mxu0
        %v2107 = vadd.f32 %v2068, %v2106
        %v2108 = vpop.f32.mrf.mxu0
        %v2109 = vadd.f32 %v2070, %v2108
        %2110 = vmatmul.bf16.gmra.mxu0 %v1510
        %v2111 = vpop.f32.mrf.mxu0
        %v2112 = vadd.f32 %v2073, %v2111
        %v2113 = vpop.f32.mrf.mxu0
        %v2114 = vadd.f32 %v2075, %v2113
        %2115 = vdwg.mxu0
        %2116 = vmatpush.bf16.msra.mxu0 0
        %2117 = vmatpush.bf16.msra.mxu0 0
        %2118 = vmatpush.bf16.msra.mxu0 0
        %2119 = vmatpush.bf16.msra.mxu0 0
        %2120 = vmatpush.bf16.msra.mxu0 0
        %2121 = vmatpush.bf16.msra.mxu0 0
        %2122 = vmatpush.bf16.msra.mxu0 0
        %2123 = vmatpush.bf16.msra.mxu0 %v994
        %2124 = vmatmul.bf16.gmra.mxu0 %v1592
        %v2125 = vpop.f32.mrf.mxu0
        %v2126 = vadd.f32 %v2087, %v2125
        %v2127 = vpop.f32.mrf.mxu0
        %v2128 = vadd.f32 %v2089, %v2127
        %2129 = vmatmul.bf16.gmra.mxu0 %v1595
        %v2130 = vpop.f32.mrf.mxu0
        %v2131 = vadd.f32 %v2092, %v2130
        %v2132 = vpop.f32.mrf.mxu0
        %v2133 = vadd.f32 %v2094, %v2132
        %2134 = vmatmul.bf16.gmra.mxu0 %v1598
        %v2135 = vpop.f32.mrf.mxu0
        %v2136 = vadd.f32 %v2097, %v2135
        %v2137 = vpop.f32.mrf.mxu0
        %v2138 = vadd.f32 %v2099, %v2137
        %2139 = vmatmul.bf16.gmra.mxu0 %v1601
        %v2140 = vpop.f32.mrf.mxu0
        %v2141 = vadd.f32 %v2102, %v2140
        %v2142 = vpop.f32.mrf.mxu0
        %v2143 = vadd.f32 %v2104, %v2142
        %2144 = vmatmul.bf16.gmra.mxu0 %v1604
        %v2145 = vpop.f32.mrf.mxu0
        %v2146 = vadd.f32 %v2107, %v2145
        %v2147 = vpop.f32.mrf.mxu0
        %v2148 = vadd.f32 %v2109, %v2147
        %2149 = vmatmul.bf16.gmra.mxu0 %v1607
        %v2150 = vpop.f32.mrf.mxu0
        %v2151 = vadd.f32 %v2112, %v2150
        %v2152 = vpop.f32.mrf.mxu0
        %v2153 = vadd.f32 %v2114, %v2152
        %2154 = vdwg.mxu0
        %2155 = vst [vmem:[%s304] sm:$0xff] %v2126
        %2156 = vst [vmem:[%s304 + $0x8] sm:$0xff] %v2128
        %2157 = vst [vmem:[%s304 + $0x10] sm:$0xff] %v2131
        %2158 = vst [vmem:[%s304 + $0x18] sm:$0xff] %v2133
        %2159 = vst [vmem:[%s304 + $0x20] sm:$0xff] %v2136
        %2160 = vst [vmem:[%s304 + $0x28] sm:$0xff] %v2138
        %2161 = vst [vmem:[%s304 + $0x30] sm:$0xff] %v2141
        %2162 = vst [vmem:[%s304 + $0x38] sm:$0xff] %v2143
        %2163 = vst [vmem:[%s304 + $0x40] sm:$0xff] %v2146
        %2164 = vst [vmem:[%s304 + $0x48] sm:$0xff] %v2148
        %2165 = vst [vmem:[%s304 + $0x50] sm:$0xff] %v2151
        %2166 = vst [vmem:[%s304 + $0x58] sm:$0xff] %v2153
        %s2167 = sand.u32 %s150, 1
        %s2168 = scalar_lea.sflag [#allocation4], %s2167
        %s2169 = sand.u32 %s150, 1
        %s2170 = smul.addr %s2169, 96
        %s2171 = scalar_lea.vmem [#allocation8], %s2170
        // Predicated region
        $region49: #{tpu_custom_call.1} parent=35 // pred_check
          %p2172 = pneg %p160
        $region50: #{tpu_custom_call.1} parent=35 // pred_check_branch
          %2174 = sbr.rel (%p2172) target = $region52
        $region51: #{tpu_custom_call.1} parent=35 // pred_region
          %2176 = vsyncadd %s2168, 0
          %s2177 = smul.addr %s28, 12
          %s2178 = sadd.s32 %s29, %s2177
          %s2179 = smul.addr %s2178, 8
          %s2180 = scalar_lea.hbm %s4, %s2179
          %s2181 = sshll.u32 %s2171, 4
          %s2182 = int_to_ptr.vmem [resolvable:$true] %s2181
          %s2183 = sshll.u32 %s2180, 4
          %s2184 = int_to_ptr.hbm [resolvable:$true] %s2183
          %2189 = dma.vmem_to_hbm [thread:$0]  %s2182, 1536, %s2184, %s2168, 128, 128, 8
        $region52: #{tpu_custom_call.1} parent=35 // pred_fallthru
          _
      $region36: #{tpu_custom_call.1} parent=5 // pred_fallthru
        _
      %p2190 = scmp.le.s32.totalorder 2, %s19
      // Predicated region
      $region53: #{tpu_custom_call.1} parent=5 // pred_check
        %p2191 = pneg %p2190
      $region54: #{tpu_custom_call.1} parent=5 // pred_check_branch
        %2193 = sbr.rel (%p2191) target = $region56
      $region55: #{tpu_custom_call.1} parent=5 // pred_region
        %s2194 = ssub.s32 %s19, 2
        // Predicated region
        $region57: #{tpu_custom_call.1} parent=55 // pred_check
          %p2195 = pneg %p166
        $region58: #{tpu_custom_call.1} parent=55 // pred_check_branch
          %2197 = sbr.rel (%p2195) target = $region60
        $region59: #{tpu_custom_call.1} parent=55 // pred_region
          %s2198 = sand.u32 %s151, 1
          %s2199 = scalar_lea.sflag [#allocation4], %s2198
          %s2200 = sand.u32 %s151, 1
          %s2201 = smul.addr %s2200, 96
          %s2202 = scalar_lea.vmem [#allocation8], %s2201
          %2204 = dma.done %s2199, 1536
        $region60: #{tpu_custom_call.1} parent=55 // pred_fallthru
          _
      $region56: #{tpu_custom_call.1} parent=5 // pred_fallthru
        _
    $region6: #{tpu_custom_call.1} parent=1 // loop_footer
      %s23 = sadd.s32 1, %s19
    $region7: #{tpu_custom_call.1} parent=1 // loop_footer_branch
      %18 = sbr.rel target = $region3
    $region8: #{tpu_custom_call.1} parent=1 // loop_exit
      _
    %2205 = vsyncpa [#allocation3], 1
    %s2206 = scalar_lea.sflag [#allocation3], 1
    %2207 = vsyncpa %s2206, 1
    %2208 = vsyncpa [#allocation6], 1
    %s2209 = scalar_lea.sflag [#allocation6], 1
    %2210 = vsyncpa %s2209, 1
    %2211 = vsyncpa [#allocation4], 1
    %s2212 = scalar_lea.sflag [#allocation4], 1
    %2213 = vsyncpa %s2212, 1

</llo_original>
